<compile_context>
chip_gen: v7x
topology: tpu7x:2x2x1
jax: 0.10.0
libtpu: 0.0.40
codegen_flags: <defaults>
</compile_context>

<pallas_src>
import functools

import jax
import jax.numpy as jnp
from jax.experimental import pallas as pl
from jax.experimental.pallas import tpu as pltpu


# ----------------------------------------------------------------------------
# Kernel
# ----------------------------------------------------------------------------
def _fcconv3_kernel(x_ref, w1_ref, w2_ref, w3_ref, sc_ref, bi_ref, o_ref,
                    slab0_ref, slab_ref, *, Bt, H, W, Cin, Cout):
    """Fused 3x(conv3x3 'same' + folded BN affine + ReLU) for Bt images.

    Slab layout (per image b, row stride S = H + 2):
        row  b*S           : zero halo (top)
        rows b*S+1 .. b*S+H: interior rows (lane axis = W*C, channel fastest)
        row  b*S+H+1       : zero halo (bottom)

    Each conv layer = 3 chained accumulating MXU matmuls (one per ky):
        acc[g] += slab[g+ky] @ big_w[ky],   g in [0, M),  M = Bt*S - 2
    Out-of-image width taps are omitted from the banded weights (they would
    multiply zeros), so there are no halo columns and K = W*C exactly.  Rows
    of `acc` centred on inter-image halo rows are garbage and never copied.
    """
    WCin, WCout = W * Cin, W * Cout
    S = H + 2
    M = Bt * S - 2

    # ---- zero ONLY the halo rows (scratch is uninitialized & persistent). ---
    # Runs every grid step (not under pl.when(program_id==0)): with
    # dimension_semantics=('parallel',) each TensorCore has its own scratch.
    zin = jnp.zeros((1, WCin), slab0_ref.dtype)
    zout = jnp.zeros((1, WCout), slab_ref.dtype)
    for b in range(Bt):
        top = b * S
        bot = b * S + H + 1
        slab0_ref[top:top + 1, :] = zin
        slab0_ref[bot:bot + 1, :] = zin
        slab_ref[top:top + 1, :] = zout
        slab_ref[bot:bot + 1, :] = zout

    # ---- layer-1 input: copy interiors (lane-dense, interior at lane 0). ----
    for b in range(Bt):
        slab0_ref[b * S + 1:b * S + 1 + H, :] = x_ref[b]

    def conv_bn_relu(src_ref, w_ref, layer):
        # One cast per layer (not per ky); 3 chained accumulating matmuls.
        src = src_ref[...].astype(w_ref.dtype)
        acc = jnp.zeros((M, WCout), jnp.float32)
        for ky in range(3):
            acc = acc + jnp.dot(src[ky:ky + M, :], w_ref[ky],
                                preferred_element_type=jnp.float32)
        scale = sc_ref[layer:layer + 1, :]   # (1, W*Cout) f32
        bias = bi_ref[layer:layer + 1, :]    # (1, W*Cout) f32
        return jnp.maximum(acc * scale + bias, 0.0)   # f32 affine + ReLU

    y = conv_bn_relu(slab0_ref, w1_ref, 0)            # (M, W*Cout) f32
    for b in range(Bt):                               # stays in VMEM
        slab_ref[b * S + 1:b * S + 1 + H, :] = y[b * S:b * S + H, :]
    y = conv_bn_relu(slab_ref, w2_ref, 1)
    for b in range(Bt):
        slab_ref[b * S + 1:b * S + 1 + H, :] = y[b * S:b * S + H, :]
    y = conv_bn_relu(slab_ref, w3_ref, 2)
    for b in range(Bt):                               # unmasked 128-lane stores
        o_ref[b, :, :] = y[b * S:b * S + H, :].astype(o_ref.dtype)


# ----------------------------------------------------------------------------
# Wrappers
# ----------------------------------------------------------------------------
def fcconv3_forward_nhwc(x_nhwc, params, batch_tile=8):
    """x_nhwc: (B, H, W, Cin) f32.  Returns (B, H, W, Cout) f32.

    Preferred entry point: no NCHW<->NHWC HBM relayouts (the reshape to the
    lane-dense (B, H, W*C) layout is free).
    """
    w1, w2, w3, scales, biases = params
    B, H, W, Cin = x_nhwc.shape
    WCout = scales.shape[-1]
    Cout = WCout // W
    WCin = W * Cin

    bt = max(1, min(batch_tile, B))
    while B % bt:           # largest tile <= batch_tile that divides B
        bt -= 1

    x2d = x_nhwc.reshape(B, H, WCin)   # free reshape: lane axis = W*Cin

    kernel = functools.partial(_fcconv3_kernel, Bt=bt, H=H, W=W,
                               Cin=Cin, Cout=Cout)

    out2d = pl.pallas_call(
        kernel,
        out_shape=jax.ShapeDtypeStruct((B, H, WCout), jnp.float32),
        grid_spec=pltpu.PrefetchScalarGridSpec(
            num_scalar_prefetch=0,
            grid=(B // bt,),
            in_specs=[
                pl.BlockSpec((bt, H, WCin), lambda b: (b, 0, 0)),
                pl.BlockSpec(w1.shape, lambda b: (0, 0, 0)),
                pl.BlockSpec(w2.shape, lambda b: (0, 0, 0)),
                pl.BlockSpec(w3.shape, lambda b: (0, 0, 0)),
                pl.BlockSpec(scales.shape, lambda b: (0, 0)),
                pl.BlockSpec(biases.shape, lambda b: (0, 0)),
            ],
            out_specs=pl.BlockSpec((bt, H, WCout), lambda b: (b, 0, 0)),
            scratch_shapes=[
                pltpu.VMEM((bt * (H + 2), WCin), jnp.float32),
                pltpu.VMEM((bt * (H + 2), WCout), jnp.float32),
            ],
        ),
        compiler_params=pltpu.CompilerParams(
            dimension_semantics=("parallel",)),   # megacore: both TCs get work
    )(x2d, w1, w2, w3, scales, biases)

    return out2d.reshape(B, H, W, Cout)


def fcconv3_forward(x_nchw, params, batch_tile=8):
    """Drop-in NCHW wrapper matching the PyTorch module's layout.

    NOTE: the two transposes below are HBM relayouts; when the surrounding
    model is NHWC, call fcconv3_forward_nhwc directly and skip them.
    """
    x_nhwc = jnp.transpose(x_nchw, (0, 2, 3, 1))
    y = fcconv3_forward_nhwc(x_nhwc, params, batch_tile)
    return jnp.transpose(y, (0, 3, 1, 2))


# ----------------------------------------------------------------------------
# Parameter preparation (host side)
# ----------------------------------------------------------------------------
def _fold_bn(conv_bias, gamma, beta, running_mean, running_var, eps=1e-5):
    """Fold conv bias + eval-mode BatchNorm into a per-channel (scale, bias)."""
    inv_std = 1.0 / jnp.sqrt(running_var + eps)
    scale = gamma * inv_std
    bias = (conv_bias - running_mean) * scale + beta
    return scale, bias


def _banded_conv_weight(w_oihw, W):
    """(Cout, Cin, 3, 3) torch conv weight -> (3, W*Cin, W*Cout).

    big[ky, wp*Cin + ci, w*Cout + co] = w_oihw[co, ci, ky, kx]
        iff wp == w + kx - 1 and 0 <= w + kx - 1 < W.
    Out-of-range width taps read the zero 'same' padding, so they are simply
    omitted: no halo columns, K = W*Cin exactly, interior starts at lane 0.
    """
    Cout, Cin, KH, KW = w_oihw.shape
    w_idx = jnp.arange(W)
    big = jnp.zeros((KH, W, Cin, W, Cout), jnp.float32)
    for kx in range(KW):
        src = w_idx + kx - 1                                    # input pixel
        valid = (src >= 0) & (src < W)
        band = ((w_idx[:, None] == src[None, :]) &
                valid[None, :]).astype(jnp.float32)             # (wp, w)
        tap = jnp.transpose(w_oihw[:, :, :, kx], (2, 1, 0))     # (ky, Cin, Cout)
        big = big + band[None, :, None, :, None] * tap[:, None, :, None, :]
    return big.reshape(KH, W * Cin, W * Cout)


def init_fcconv3_torch_params(key, in_size, out_size):
    """Deterministic synthetic parameters with the PyTorch module's shapes."""
    layers = []
    c_in = in_size
    for _ in range(3):
        key, kw, kb, kg, kbe, km, kv = jax.random.split(key, 7)
        w = jax.random.normal(kw, (out_size, c_in, 3, 3), jnp.float32) * 0.1
        b = jax.random.normal(kb, (out_size,), jnp.float32) * 0.1
        gamma = 1.0 + 0.1 * jax.random.normal(kg, (out_size,), jnp.float32)
        beta = 0.1 * jax.random.normal(kbe, (out_size,), jnp.float32)
        r_mean = 0.1 * jax.random.normal(km, (out_size,), jnp.float32)
        r_var = jnp.abs(jax.random.normal(kv, (out_size,), jnp.float32)) + 0.5
        layers.append((w, b, gamma, beta, r_mean, r_var))
        c_in = out_size
    return layers


def prepare_fcconv3_params(torch_layers, W, compute_dtype=jnp.bfloat16):
    """Build banded lane-dense weights + W-tiled folded BN affine.

    bf16 is the default compute dtype on every TPU generation (the MXU is
    natively bf16 on v5e as well as v6e/v7x); accumulation and the affine+ReLU
    stay f32 in-kernel.  Pass jnp.float32 for a tight-tolerance path.
    """
    ws, scales, biases = [], [], []
    for (w, b, gamma, beta, r_mean, r_var) in torch_layers:
        ws.append(_banded_conv_weight(w, W).astype(compute_dtype))
        scale, bias = _fold_bn(b, gamma, beta, r_mean, r_var)
        scales.append(jnp.tile(scale, W))     # (W*Cout,) matches out columns
        biases.append(jnp.tile(bias, W))
    scales = jnp.stack(scales).astype(jnp.float32)       # (3, W*Cout)
    biases = jnp.stack(biases).astype(jnp.float32)
    return (ws[0], ws[1], ws[2], scales, biases)


# ----------------------------------------------------------------------------
# Pure-JAX reference (lax conv) for correctness checking
# ----------------------------------------------------------------------------
def _reference_forward(x_nchw, torch_layers, eps=1e-5):
    x = x_nchw
    for (w, b, gamma, beta, r_mean, r_var) in torch_layers:
        y = jax.lax.conv_general_dilated(
            x, w, window_strides=(1, 1), padding="SAME",
            dimension_numbers=("NCHW", "OIHW", "NCHW"))
        y = y + b[None, :, None, None]
        y = (y - r_mean[None, :, None, None]) / jnp.sqrt(
            r_var[None, :, None, None] + eps)
        y = y * gamma[None, :, None, None] + beta[None, :, None, None]
        x = jnp.maximum(y, 0.0)
    return x


if __name__ == "__main__":
    B, Cin, Cout, H, W = 8, 4, 8, 16, 16

    key = jax.random.PRNGKey(0)
    key, kx = jax.random.split(key)
    x = jax.random.normal(kx, (B, Cin, H, W), jnp.float32)

    torch_layers = init_fcconv3_torch_params(key, Cin, Cout)
    ref = _reference_forward(x, torch_layers)

    fwd = jax.jit(fcconv3_forward, static_argnames=("batch_tile",))

    # f32 MXU path (tight tolerance vs. the f32 reference).
    params_f32 = prepare_fcconv3_params(torch_layers, W, jnp.float32)
    out = jax.block_until_ready(fwd(x, params_f32, batch_tile=4))
    assert out.shape == (B, Cout, H, W)
    assert jnp.allclose(out, ref, atol=1e-4, rtol=1e-4), "f32 mismatch vs reference"

    # Default bf16 path (bf16 MXU on v5e/v6e/v7x; f32 accumulation), loose tol.
    params_bf16 = prepare_fcconv3_params(torch_layers, W)   # bf16 default
    out_bf16 = jax.block_until_ready(fwd(x, params_bf16, batch_tile=4))
    assert jnp.allclose(out_bf16, ref, atol=2e-1, rtol=5e-2), "bf16 mismatch vs reference"

    print("KERNEL_OK")
</pallas_src>

<mosaic_0001>
module attributes {stable_mosaic.version = 11 : i64} {
  func.func @_fcconv3_kernel(%arg0: i32, %arg1: memref<4x16x64xf32, #tpu.memory_space<vmem>>, %arg2: memref<3x64x128xf32, #tpu.memory_space<vmem>>, %arg3: memref<3x128x128xf32, #tpu.memory_space<vmem>>, %arg4: memref<3x128x128xf32, #tpu.memory_space<vmem>>, %arg5: memref<3x128xf32, #tpu.memory_space<vmem>>, %arg6: memref<3x128xf32, #tpu.memory_space<vmem>>, %arg7: memref<4x16x128xf32, #tpu.memory_space<vmem>>, %arg8: memref<72x64xf32, #tpu.memory_space<vmem>>, %arg9: memref<72x128xf32, #tpu.memory_space<vmem>>) attributes {dimension_semantics = [#tpu.dimension_semantics<parallel>], iteration_bounds = array<i64: 2>, scalar_prefetch = 0 : i64, scratch_operands = 2 : i64, tpu.core_type = #tpu.core_type<tc>, window_params = [{transform_indices = @transform_0, window_bounds = array<i64: 4, 16, 64>}, {pipeline_mode = #tpu.pipeline_mode<synchronous>, transform_indices = @transform_1, window_bounds = array<i64: 3, 64, 128>}, {pipeline_mode = #tpu.pipeline_mode<synchronous>, transform_indices = @transform_2, window_bounds = array<i64: 3, 128, 128>}, {pipeline_mode = #tpu.pipeline_mode<synchronous>, transform_indices = @transform_3, window_bounds = array<i64: 3, 128, 128>}, {pipeline_mode = #tpu.pipeline_mode<synchronous>, transform_indices = @transform_4, window_bounds = array<i64: 3, 128>}, {pipeline_mode = #tpu.pipeline_mode<synchronous>, transform_indices = @transform_5, window_bounds = array<i64: 3, 128>}, {transform_indices = @transform_6, window_bounds = array<i64: 4, 16, 128>}]} {
    %cst = arith.constant 0.000000e+00 : f32
    %0 = vector.broadcast %cst : f32 to vector<1x64xf32>
    %cst_0 = arith.constant 0.000000e+00 : f32
    %1 = vector.broadcast %cst_0 : f32 to vector<1x128xf32>
    %c0 = arith.constant 0 : index
    %c0_1 = arith.constant 0 : index
    %2 = vector.load %arg8[%c0, %c0_1] : memref<72x64xf32, #tpu.memory_space<vmem>>, vector<1x64xf32>
    tpu.vector_store %arg8[%c0, %c0_1], %0 {strides = array<i32>} : memref<72x64xf32, #tpu.memory_space<vmem>>, vector<1x64xf32>,
    %c17 = arith.constant 17 : index
    %c0_2 = arith.constant 0 : index
    %3 = vector.load %arg8[%c17, %c0_2] : memref<72x64xf32, #tpu.memory_space<vmem>>, vector<1x64xf32>
    tpu.vector_store %arg8[%c17, %c0_2], %0 {strides = array<i32>} : memref<72x64xf32, #tpu.memory_space<vmem>>, vector<1x64xf32>,
    %c0_3 = arith.constant 0 : index
    %c0_4 = arith.constant 0 : index
    %4 = vector.load %arg9[%c0_3, %c0_4] : memref<72x128xf32, #tpu.memory_space<vmem>>, vector<1x128xf32>
    tpu.vector_store %arg9[%c0_3, %c0_4], %1 {strides = array<i32>} : memref<72x128xf32, #tpu.memory_space<vmem>>, vector<1x128xf32>,
    %c17_5 = arith.constant 17 : index
    %c0_6 = arith.constant 0 : index
    %5 = vector.load %arg9[%c17_5, %c0_6] : memref<72x128xf32, #tpu.memory_space<vmem>>, vector<1x128xf32>
    tpu.vector_store %arg9[%c17_5, %c0_6], %1 {strides = array<i32>} : memref<72x128xf32, #tpu.memory_space<vmem>>, vector<1x128xf32>,
    %c18 = arith.constant 18 : index
    %c0_7 = arith.constant 0 : index
    %6 = vector.load %arg8[%c18, %c0_7] : memref<72x64xf32, #tpu.memory_space<vmem>>, vector<1x64xf32>
    tpu.vector_store %arg8[%c18, %c0_7], %0 {strides = array<i32>} : memref<72x64xf32, #tpu.memory_space<vmem>>, vector<1x64xf32>,
    %c35 = arith.constant 35 : index
    %c0_8 = arith.constant 0 : index
    %7 = vector.load %arg8[%c35, %c0_8] : memref<72x64xf32, #tpu.memory_space<vmem>>, vector<1x64xf32>
    tpu.vector_store %arg8[%c35, %c0_8], %0 {strides = array<i32>} : memref<72x64xf32, #tpu.memory_space<vmem>>, vector<1x64xf32>,
    %c18_9 = arith.constant 18 : index
    %c0_10 = arith.constant 0 : index
    %8 = vector.load %arg9[%c18_9, %c0_10] : memref<72x128xf32, #tpu.memory_space<vmem>>, vector<1x128xf32>
    tpu.vector_store %arg9[%c18_9, %c0_10], %1 {strides = array<i32>} : memref<72x128xf32, #tpu.memory_space<vmem>>, vector<1x128xf32>,
    %c35_11 = arith.constant 35 : index
    %c0_12 = arith.constant 0 : index
    %9 = vector.load %arg9[%c35_11, %c0_12] : memref<72x128xf32, #tpu.memory_space<vmem>>, vector<1x128xf32>
    tpu.vector_store %arg9[%c35_11, %c0_12], %1 {strides = array<i32>} : memref<72x128xf32, #tpu.memory_space<vmem>>, vector<1x128xf32>,
    %c36 = arith.constant 36 : index
    %c0_13 = arith.constant 0 : index
    %10 = vector.load %arg8[%c36, %c0_13] : memref<72x64xf32, #tpu.memory_space<vmem>>, vector<1x64xf32>
    tpu.vector_store %arg8[%c36, %c0_13], %0 {strides = array<i32>} : memref<72x64xf32, #tpu.memory_space<vmem>>, vector<1x64xf32>,
    %c53 = arith.constant 53 : index
    %c0_14 = arith.constant 0 : index
    %11 = vector.load %arg8[%c53, %c0_14] : memref<72x64xf32, #tpu.memory_space<vmem>>, vector<1x64xf32>
    tpu.vector_store %arg8[%c53, %c0_14], %0 {strides = array<i32>} : memref<72x64xf32, #tpu.memory_space<vmem>>, vector<1x64xf32>,
    %c36_15 = arith.constant 36 : index
    %c0_16 = arith.constant 0 : index
    %12 = vector.load %arg9[%c36_15, %c0_16] : memref<72x128xf32, #tpu.memory_space<vmem>>, vector<1x128xf32>
    tpu.vector_store %arg9[%c36_15, %c0_16], %1 {strides = array<i32>} : memref<72x128xf32, #tpu.memory_space<vmem>>, vector<1x128xf32>,
    %c53_17 = arith.constant 53 : index
    %c0_18 = arith.constant 0 : index
    %13 = vector.load %arg9[%c53_17, %c0_18] : memref<72x128xf32, #tpu.memory_space<vmem>>, vector<1x128xf32>
    tpu.vector_store %arg9[%c53_17, %c0_18], %1 {strides = array<i32>} : memref<72x128xf32, #tpu.memory_space<vmem>>, vector<1x128xf32>,
    %c54 = arith.constant 54 : index
    %c0_19 = arith.constant 0 : index
    %14 = vector.load %arg8[%c54, %c0_19] : memref<72x64xf32, #tpu.memory_space<vmem>>, vector<1x64xf32>
    tpu.vector_store %arg8[%c54, %c0_19], %0 {strides = array<i32>} : memref<72x64xf32, #tpu.memory_space<vmem>>, vector<1x64xf32>,
    %c71 = arith.constant 71 : index
    %c0_20 = arith.constant 0 : index
    %15 = vector.load %arg8[%c71, %c0_20] : memref<72x64xf32, #tpu.memory_space<vmem>>, vector<1x64xf32>
    tpu.vector_store %arg8[%c71, %c0_20], %0 {strides = array<i32>} : memref<72x64xf32, #tpu.memory_space<vmem>>, vector<1x64xf32>,
    %c54_21 = arith.constant 54 : index
    %c0_22 = arith.constant 0 : index
    %16 = vector.load %arg9[%c54_21, %c0_22] : memref<72x128xf32, #tpu.memory_space<vmem>>, vector<1x128xf32>
    tpu.vector_store %arg9[%c54_21, %c0_22], %1 {strides = array<i32>} : memref<72x128xf32, #tpu.memory_space<vmem>>, vector<1x128xf32>,
    %c71_23 = arith.constant 71 : index
    %c0_24 = arith.constant 0 : index
    %17 = vector.load %arg9[%c71_23, %c0_24] : memref<72x128xf32, #tpu.memory_space<vmem>>, vector<1x128xf32>
    tpu.vector_store %arg9[%c71_23, %c0_24], %1 {strides = array<i32>} : memref<72x128xf32, #tpu.memory_space<vmem>>, vector<1x128xf32>,
    %c0_25 = arith.constant 0 : index
    %c0_26 = arith.constant 0 : index
    %c0_27 = arith.constant 0 : index
    %18 = vector.load %arg1[%c0_25, %c0_26, %c0_27] : memref<4x16x64xf32, #tpu.memory_space<vmem>>, vector<1x16x64xf32>
    %19 = vector.shape_cast %18 : vector<1x16x64xf32> to vector<16x64xf32>
    %c1 = arith.constant 1 : index
    %c0_28 = arith.constant 0 : index
    %20 = vector.load %arg8[%c1, %c0_28] : memref<72x64xf32, #tpu.memory_space<vmem>>, vector<16x64xf32>
    tpu.vector_store %arg8[%c1, %c0_28], %19 {strides = array<i32>} : memref<72x64xf32, #tpu.memory_space<vmem>>, vector<16x64xf32>,
    %c1_29 = arith.constant 1 : index
    %c0_30 = arith.constant 0 : index
    %c0_31 = arith.constant 0 : index
    %21 = vector.load %arg1[%c1_29, %c0_30, %c0_31] : memref<4x16x64xf32, #tpu.memory_space<vmem>>, vector<1x16x64xf32>
    %22 = vector.shape_cast %21 : vector<1x16x64xf32> to vector<16x64xf32>
    %c19 = arith.constant 19 : index
    %c0_32 = arith.constant 0 : index
    %23 = vector.load %arg8[%c19, %c0_32] : memref<72x64xf32, #tpu.memory_space<vmem>>, vector<16x64xf32>
    tpu.vector_store %arg8[%c19, %c0_32], %22 {strides = array<i32>} : memref<72x64xf32, #tpu.memory_space<vmem>>, vector<16x64xf32>,
    %c2 = arith.constant 2 : index
    %c0_33 = arith.constant 0 : index
    %c0_34 = arith.constant 0 : index
    %24 = vector.load %arg1[%c2, %c0_33, %c0_34] : memref<4x16x64xf32, #tpu.memory_space<vmem>>, vector<1x16x64xf32>
    %25 = vector.shape_cast %24 : vector<1x16x64xf32> to vector<16x64xf32>
    %c37 = arith.constant 37 : index
    %c0_35 = arith.constant 0 : index
    %26 = vector.load %arg8[%c37, %c0_35] : memref<72x64xf32, #tpu.memory_space<vmem>>, vector<16x64xf32>
    tpu.vector_store %arg8[%c37, %c0_35], %25 {strides = array<i32>} : memref<72x64xf32, #tpu.memory_space<vmem>>, vector<16x64xf32>,
    %c3 = arith.constant 3 : index
    %c0_36 = arith.constant 0 : index
    %c0_37 = arith.constant 0 : index
    %27 = vector.load %arg1[%c3, %c0_36, %c0_37] : memref<4x16x64xf32, #tpu.memory_space<vmem>>, vector<1x16x64xf32>
    %28 = vector.shape_cast %27 : vector<1x16x64xf32> to vector<16x64xf32>
    %c55 = arith.constant 55 : index
    %c0_38 = arith.constant 0 : index
    %29 = vector.load %arg8[%c55, %c0_38] : memref<72x64xf32, #tpu.memory_space<vmem>>, vector<16x64xf32>
    tpu.vector_store %arg8[%c55, %c0_38], %28 {strides = array<i32>} : memref<72x64xf32, #tpu.memory_space<vmem>>, vector<16x64xf32>,
    %c0_39 = arith.constant 0 : index
    %c0_40 = arith.constant 0 : index
    %30 = vector.load %arg8[%c0_39, %c0_40] : memref<72x64xf32, #tpu.memory_space<vmem>>, vector<72x64xf32>
    %cst_41 = arith.constant 0.000000e+00 : f32
    %31 = vector.broadcast %cst_41 : f32 to vector<70x128xf32>
    %32 = vector.extract_strided_slice %30 {offsets = [0, 0], sizes = [70, 64], strides = [1, 1]} : vector<72x64xf32> to vector<70x64xf32>
    %c0_42 = arith.constant 0 : index
    %c0_43 = arith.constant 0 : index
    %c0_44 = arith.constant 0 : index
    %33 = vector.load %arg2[%c0_42, %c0_43, %c0_44] : memref<3x64x128xf32, #tpu.memory_space<vmem>>, vector<1x64x128xf32>
    %34 = vector.shape_cast %33 : vector<1x64x128xf32> to vector<64x128xf32>
    %cst_45 = arith.constant dense<0.000000e+00> : vector<70x128xf32>
    %35 = tpu.matmul %32, %34, %cst_45 {dimension_numbers = #tpu.dot_dimension_numbers<[1], [0], [0], [1], [0, 0, 1, 1], [], []>} : vector<70x64xf32>, vector<64x128xf32>, vector<70x128xf32> -> vector<70x128xf32>
    %36 = arith.addf %31, %35 : vector<70x128xf32>
    %37 = vector.extract_strided_slice %30 {offsets = [1, 0], sizes = [70, 64], strides = [1, 1]} : vector<72x64xf32> to vector<70x64xf32>
    %c1_46 = arith.constant 1 : index
    %c0_47 = arith.constant 0 : index
    %c0_48 = arith.constant 0 : index
    %38 = vector.load %arg2[%c1_46, %c0_47, %c0_48] : memref<3x64x128xf32, #tpu.memory_space<vmem>>, vector<1x64x128xf32>
    %39 = vector.shape_cast %38 : vector<1x64x128xf32> to vector<64x128xf32>
    %cst_49 = arith.constant dense<0.000000e+00> : vector<70x128xf32>
    %40 = tpu.matmul %37, %39, %cst_49 {dimension_numbers = #tpu.dot_dimension_numbers<[1], [0], [0], [1], [0, 0, 1, 1], [], []>} : vector<70x64xf32>, vector<64x128xf32>, vector<70x128xf32> -> vector<70x128xf32>
    %41 = arith.addf %36, %40 : vector<70x128xf32>
    %42 = vector.extract_strided_slice %30 {offsets = [2, 0], sizes = [70, 64], strides = [1, 1]} : vector<72x64xf32> to vector<70x64xf32>
    %c2_50 = arith.constant 2 : index
    %c0_51 = arith.constant 0 : index
    %c0_52 = arith.constant 0 : index
    %43 = vector.load %arg2[%c2_50, %c0_51, %c0_52] : memref<3x64x128xf32, #tpu.memory_space<vmem>>, vector<1x64x128xf32>
    %44 = vector.shape_cast %43 : vector<1x64x128xf32> to vector<64x128xf32>
    %cst_53 = arith.constant dense<0.000000e+00> : vector<70x128xf32>
    %45 = tpu.matmul %42, %44, %cst_53 {dimension_numbers = #tpu.dot_dimension_numbers<[1], [0], [0], [1], [0, 0, 1, 1], [], []>} : vector<70x64xf32>, vector<64x128xf32>, vector<70x128xf32> -> vector<70x128xf32>
    %46 = arith.addf %41, %45 : vector<70x128xf32>
    %c0_54 = arith.constant 0 : index
    %c0_55 = arith.constant 0 : index
    %47 = vector.load %arg5[%c0_54, %c0_55] : memref<3x128xf32, #tpu.memory_space<vmem>>, vector<1x128xf32>
    %c0_56 = arith.constant 0 : index
    %c0_57 = arith.constant 0 : index
    %48 = vector.load %arg6[%c0_56, %c0_57] : memref<3x128xf32, #tpu.memory_space<vmem>>, vector<1x128xf32>
    %49 = vector.broadcast %47 : vector<1x128xf32> to vector<70x128xf32>
    %50 = arith.mulf %46, %49 : vector<70x128xf32>
    %51 = vector.broadcast %48 : vector<1x128xf32> to vector<70x128xf32>
    %52 = arith.addf %50, %51 : vector<70x128xf32>
    %cst_58 = arith.constant 0.000000e+00 : f32
    %53 = vector.broadcast %cst_58 : f32 to vector<70x128xf32>
    %54 = arith.maximumf %52, %53 : vector<70x128xf32>
    %55 = vector.extract_strided_slice %54 {offsets = [0, 0], sizes = [16, 128], strides = [1, 1]} : vector<70x128xf32> to vector<16x128xf32>
    %c1_59 = arith.constant 1 : index
    %c0_60 = arith.constant 0 : index
    %56 = vector.load %arg9[%c1_59, %c0_60] : memref<72x128xf32, #tpu.memory_space<vmem>>, vector<16x128xf32>
    tpu.vector_store %arg9[%c1_59, %c0_60], %55 {strides = array<i32>} : memref<72x128xf32, #tpu.memory_space<vmem>>, vector<16x128xf32>,
    %57 = vector.extract_strided_slice %54 {offsets = [18, 0], sizes = [16, 128], strides = [1, 1]} : vector<70x128xf32> to vector<16x128xf32>
    %c19_61 = arith.constant 19 : index
    %c0_62 = arith.constant 0 : index
    %58 = vector.load %arg9[%c19_61, %c0_62] : memref<72x128xf32, #tpu.memory_space<vmem>>, vector<16x128xf32>
    tpu.vector_store %arg9[%c19_61, %c0_62], %57 {strides = array<i32>} : memref<72x128xf32, #tpu.memory_space<vmem>>, vector<16x128xf32>,
    %59 = vector.extract_strided_slice %54 {offsets = [36, 0], sizes = [16, 128], strides = [1, 1]} : vector<70x128xf32> to vector<16x128xf32>
    %c37_63 = arith.constant 37 : index
    %c0_64 = arith.constant 0 : index
    %60 = vector.load %arg9[%c37_63, %c0_64] : memref<72x128xf32, #tpu.memory_space<vmem>>, vector<16x128xf32>
    tpu.vector_store %arg9[%c37_63, %c0_64], %59 {strides = array<i32>} : memref<72x128xf32, #tpu.memory_space<vmem>>, vector<16x128xf32>,
    %61 = vector.extract_strided_slice %54 {offsets = [54, 0], sizes = [16, 128], strides = [1, 1]} : vector<70x128xf32> to vector<16x128xf32>
    %c55_65 = arith.constant 55 : index
    %c0_66 = arith.constant 0 : index
    %62 = vector.load %arg9[%c55_65, %c0_66] : memref<72x128xf32, #tpu.memory_space<vmem>>, vector<16x128xf32>
    tpu.vector_store %arg9[%c55_65, %c0_66], %61 {strides = array<i32>} : memref<72x128xf32, #tpu.memory_space<vmem>>, vector<16x128xf32>,
    %c0_67 = arith.constant 0 : index
    %c0_68 = arith.constant 0 : index
    %63 = vector.load %arg9[%c0_67, %c0_68] : memref<72x128xf32, #tpu.memory_space<vmem>>, vector<72x128xf32>
    %cst_69 = arith.constant 0.000000e+00 : f32
    %64 = vector.broadcast %cst_69 : f32 to vector<70x128xf32>
    %65 = vector.extract_strided_slice %63 {offsets = [0, 0], sizes = [70, 128], strides = [1, 1]} : vector<72x128xf32> to vector<70x128xf32>
    %c0_70 = arith.constant 0 : index
    %c0_71 = arith.constant 0 : index
    %c0_72 = arith.constant 0 : index
    %66 = vector.load %arg3[%c0_70, %c0_71, %c0_72] : memref<3x128x128xf32, #tpu.memory_space<vmem>>, vector<1x128x128xf32>
    %67 = vector.shape_cast %66 : vector<1x128x128xf32> to vector<128x128xf32>
    %cst_73 = arith.constant dense<0.000000e+00> : vector<70x128xf32>
    %68 = tpu.matmul %65, %67, %cst_73 {dimension_numbers = #tpu.dot_dimension_numbers<[1], [0], [0], [1], [0, 0, 1, 1], [], []>} : vector<70x128xf32>, vector<128x128xf32>, vector<70x128xf32> -> vector<70x128xf32>
    %69 = arith.addf %64, %68 : vector<70x128xf32>
    %70 = vector.extract_strided_slice %63 {offsets = [1, 0], sizes = [70, 128], strides = [1, 1]} : vector<72x128xf32> to vector<70x128xf32>
    %c1_74 = arith.constant 1 : index
    %c0_75 = arith.constant 0 : index
    %c0_76 = arith.constant 0 : index
    %71 = vector.load %arg3[%c1_74, %c0_75, %c0_76] : memref<3x128x128xf32, #tpu.memory_space<vmem>>, vector<1x128x128xf32>
    %72 = vector.shape_cast %71 : vector<1x128x128xf32> to vector<128x128xf32>
    %cst_77 = arith.constant dense<0.000000e+00> : vector<70x128xf32>
    %73 = tpu.matmul %70, %72, %cst_77 {dimension_numbers = #tpu.dot_dimension_numbers<[1], [0], [0], [1], [0, 0, 1, 1], [], []>} : vector<70x128xf32>, vector<128x128xf32>, vector<70x128xf32> -> vector<70x128xf32>
    %74 = arith.addf %69, %73 : vector<70x128xf32>
    %75 = vector.extract_strided_slice %63 {offsets = [2, 0], sizes = [70, 128], strides = [1, 1]} : vector<72x128xf32> to vector<70x128xf32>
    %c2_78 = arith.constant 2 : index
    %c0_79 = arith.constant 0 : index
    %c0_80 = arith.constant 0 : index
    %76 = vector.load %arg3[%c2_78, %c0_79, %c0_80] : memref<3x128x128xf32, #tpu.memory_space<vmem>>, vector<1x128x128xf32>
    %77 = vector.shape_cast %76 : vector<1x128x128xf32> to vector<128x128xf32>
    %cst_81 = arith.constant dense<0.000000e+00> : vector<70x128xf32>
    %78 = tpu.matmul %75, %77, %cst_81 {dimension_numbers = #tpu.dot_dimension_numbers<[1], [0], [0], [1], [0, 0, 1, 1], [], []>} : vector<70x128xf32>, vector<128x128xf32>, vector<70x128xf32> -> vector<70x128xf32>
    %79 = arith.addf %74, %78 : vector<70x128xf32>
    %c1_82 = arith.constant 1 : index
    %c0_83 = arith.constant 0 : index
    %80 = vector.load %arg5[%c1_82, %c0_83] : memref<3x128xf32, #tpu.memory_space<vmem>>, vector<1x128xf32>
    %c1_84 = arith.constant 1 : index
    %c0_85 = arith.constant 0 : index
    %81 = vector.load %arg6[%c1_84, %c0_85] : memref<3x128xf32, #tpu.memory_space<vmem>>, vector<1x128xf32>
    %82 = vector.broadcast %80 : vector<1x128xf32> to vector<70x128xf32>
    %83 = arith.mulf %79, %82 : vector<70x128xf32>
    %84 = vector.broadcast %81 : vector<1x128xf32> to vector<70x128xf32>
    %85 = arith.addf %83, %84 : vector<70x128xf32>
    %cst_86 = arith.constant 0.000000e+00 : f32
    %86 = vector.broadcast %cst_86 : f32 to vector<70x128xf32>
    %87 = arith.maximumf %85, %86 : vector<70x128xf32>
    %88 = vector.extract_strided_slice %87 {offsets = [0, 0], sizes = [16, 128], strides = [1, 1]} : vector<70x128xf32> to vector<16x128xf32>
    %c1_87 = arith.constant 1 : index
    %c0_88 = arith.constant 0 : index
    %89 = vector.load %arg9[%c1_87, %c0_88] : memref<72x128xf32, #tpu.memory_space<vmem>>, vector<16x128xf32>
    tpu.vector_store %arg9[%c1_87, %c0_88], %88 {strides = array<i32>} : memref<72x128xf32, #tpu.memory_space<vmem>>, vector<16x128xf32>,
    %90 = vector.extract_strided_slice %87 {offsets = [18, 0], sizes = [16, 128], strides = [1, 1]} : vector<70x128xf32> to vector<16x128xf32>
    %c19_89 = arith.constant 19 : index
    %c0_90 = arith.constant 0 : index
    %91 = vector.load %arg9[%c19_89, %c0_90] : memref<72x128xf32, #tpu.memory_space<vmem>>, vector<16x128xf32>
    tpu.vector_store %arg9[%c19_89, %c0_90], %90 {strides = array<i32>} : memref<72x128xf32, #tpu.memory_space<vmem>>, vector<16x128xf32>,
    %92 = vector.extract_strided_slice %87 {offsets = [36, 0], sizes = [16, 128], strides = [1, 1]} : vector<70x128xf32> to vector<16x128xf32>
    %c37_91 = arith.constant 37 : index
    %c0_92 = arith.constant 0 : index
    %93 = vector.load %arg9[%c37_91, %c0_92] : memref<72x128xf32, #tpu.memory_space<vmem>>, vector<16x128xf32>
    tpu.vector_store %arg9[%c37_91, %c0_92], %92 {strides = array<i32>} : memref<72x128xf32, #tpu.memory_space<vmem>>, vector<16x128xf32>,
    %94 = vector.extract_strided_slice %87 {offsets = [54, 0], sizes = [16, 128], strides = [1, 1]} : vector<70x128xf32> to vector<16x128xf32>
    %c55_93 = arith.constant 55 : index
    %c0_94 = arith.constant 0 : index
    %95 = vector.load %arg9[%c55_93, %c0_94] : memref<72x128xf32, #tpu.memory_space<vmem>>, vector<16x128xf32>
    tpu.vector_store %arg9[%c55_93, %c0_94], %94 {strides = array<i32>} : memref<72x128xf32, #tpu.memory_space<vmem>>, vector<16x128xf32>,
    %c0_95 = arith.constant 0 : index
    %c0_96 = arith.constant 0 : index
    %96 = vector.load %arg9[%c0_95, %c0_96] : memref<72x128xf32, #tpu.memory_space<vmem>>, vector<72x128xf32>
    %cst_97 = arith.constant 0.000000e+00 : f32
    %97 = vector.broadcast %cst_97 : f32 to vector<70x128xf32>
    %98 = vector.extract_strided_slice %96 {offsets = [0, 0], sizes = [70, 128], strides = [1, 1]} : vector<72x128xf32> to vector<70x128xf32>
    %c0_98 = arith.constant 0 : index
    %c0_99 = arith.constant 0 : index
    %c0_100 = arith.constant 0 : index
    %99 = vector.load %arg4[%c0_98, %c0_99, %c0_100] : memref<3x128x128xf32, #tpu.memory_space<vmem>>, vector<1x128x128xf32>
    %100 = vector.shape_cast %99 : vector<1x128x128xf32> to vector<128x128xf32>
    %cst_101 = arith.constant dense<0.000000e+00> : vector<70x128xf32>
    %101 = tpu.matmul %98, %100, %cst_101 {dimension_numbers = #tpu.dot_dimension_numbers<[1], [0], [0], [1], [0, 0, 1, 1], [], []>} : vector<70x128xf32>, vector<128x128xf32>, vector<70x128xf32> -> vector<70x128xf32>
    %102 = arith.addf %97, %101 : vector<70x128xf32>
    %103 = vector.extract_strided_slice %96 {offsets = [1, 0], sizes = [70, 128], strides = [1, 1]} : vector<72x128xf32> to vector<70x128xf32>
    %c1_102 = arith.constant 1 : index
    %c0_103 = arith.constant 0 : index
    %c0_104 = arith.constant 0 : index
    %104 = vector.load %arg4[%c1_102, %c0_103, %c0_104] : memref<3x128x128xf32, #tpu.memory_space<vmem>>, vector<1x128x128xf32>
    %105 = vector.shape_cast %104 : vector<1x128x128xf32> to vector<128x128xf32>
    %cst_105 = arith.constant dense<0.000000e+00> : vector<70x128xf32>
    %106 = tpu.matmul %103, %105, %cst_105 {dimension_numbers = #tpu.dot_dimension_numbers<[1], [0], [0], [1], [0, 0, 1, 1], [], []>} : vector<70x128xf32>, vector<128x128xf32>, vector<70x128xf32> -> vector<70x128xf32>
    %107 = arith.addf %102, %106 : vector<70x128xf32>
    %108 = vector.extract_strided_slice %96 {offsets = [2, 0], sizes = [70, 128], strides = [1, 1]} : vector<72x128xf32> to vector<70x128xf32>
    %c2_106 = arith.constant 2 : index
    %c0_107 = arith.constant 0 : index
    %c0_108 = arith.constant 0 : index
    %109 = vector.load %arg4[%c2_106, %c0_107, %c0_108] : memref<3x128x128xf32, #tpu.memory_space<vmem>>, vector<1x128x128xf32>
    %110 = vector.shape_cast %109 : vector<1x128x128xf32> to vector<128x128xf32>
    %cst_109 = arith.constant dense<0.000000e+00> : vector<70x128xf32>
    %111 = tpu.matmul %108, %110, %cst_109 {dimension_numbers = #tpu.dot_dimension_numbers<[1], [0], [0], [1], [0, 0, 1, 1], [], []>} : vector<70x128xf32>, vector<128x128xf32>, vector<70x128xf32> -> vector<70x128xf32>
    %112 = arith.addf %107, %111 : vector<70x128xf32>
    %c2_110 = arith.constant 2 : index
    %c0_111 = arith.constant 0 : index
    %113 = vector.load %arg5[%c2_110, %c0_111] : memref<3x128xf32, #tpu.memory_space<vmem>>, vector<1x128xf32>
    %c2_112 = arith.constant 2 : index
    %c0_113 = arith.constant 0 : index
    %114 = vector.load %arg6[%c2_112, %c0_113] : memref<3x128xf32, #tpu.memory_space<vmem>>, vector<1x128xf32>
    %115 = vector.broadcast %113 : vector<1x128xf32> to vector<70x128xf32>
    %116 = arith.mulf %112, %115 : vector<70x128xf32>
    %117 = vector.broadcast %114 : vector<1x128xf32> to vector<70x128xf32>
    %118 = arith.addf %116, %117 : vector<70x128xf32>
    %cst_114 = arith.constant 0.000000e+00 : f32
    %119 = vector.broadcast %cst_114 : f32 to vector<70x128xf32>
    %120 = arith.maximumf %118, %119 : vector<70x128xf32>
    %121 = vector.extract_strided_slice %120 {offsets = [0, 0], sizes = [16, 128], strides = [1, 1]} : vector<70x128xf32> to vector<16x128xf32>
    %c0_115 = arith.constant 0 : index
    %c0_116 = arith.constant 0 : index
    %c0_117 = arith.constant 0 : index
    %122 = vector.load %arg7[%c0_115, %c0_116, %c0_117] : memref<4x16x128xf32, #tpu.memory_space<vmem>>, vector<1x16x128xf32>
    %123 = vector.shape_cast %122 : vector<1x16x128xf32> to vector<16x128xf32>
    %124 = vector.shape_cast %121 : vector<16x128xf32> to vector<1x16x128xf32>
    tpu.vector_store %arg7[%c0_115, %c0_116, %c0_117], %124 {strides = array<i32>} : memref<4x16x128xf32, #tpu.memory_space<vmem>>, vector<1x16x128xf32>,
    %125 = vector.extract_strided_slice %120 {offsets = [18, 0], sizes = [16, 128], strides = [1, 1]} : vector<70x128xf32> to vector<16x128xf32>
    %c1_118 = arith.constant 1 : index
    %c0_119 = arith.constant 0 : index
    %c0_120 = arith.constant 0 : index
    %126 = vector.load %arg7[%c1_118, %c0_119, %c0_120] : memref<4x16x128xf32, #tpu.memory_space<vmem>>, vector<1x16x128xf32>
    %127 = vector.shape_cast %126 : vector<1x16x128xf32> to vector<16x128xf32>
    %128 = vector.shape_cast %125 : vector<16x128xf32> to vector<1x16x128xf32>
    tpu.vector_store %arg7[%c1_118, %c0_119, %c0_120], %128 {strides = array<i32>} : memref<4x16x128xf32, #tpu.memory_space<vmem>>, vector<1x16x128xf32>,
    %129 = vector.extract_strided_slice %120 {offsets = [36, 0], sizes = [16, 128], strides = [1, 1]} : vector<70x128xf32> to vector<16x128xf32>
    %c2_121 = arith.constant 2 : index
    %c0_122 = arith.constant 0 : index
    %c0_123 = arith.constant 0 : index
    %130 = vector.load %arg7[%c2_121, %c0_122, %c0_123] : memref<4x16x128xf32, #tpu.memory_space<vmem>>, vector<1x16x128xf32>
    %131 = vector.shape_cast %130 : vector<1x16x128xf32> to vector<16x128xf32>
    %132 = vector.shape_cast %129 : vector<16x128xf32> to vector<1x16x128xf32>
    tpu.vector_store %arg7[%c2_121, %c0_122, %c0_123], %132 {strides = array<i32>} : memref<4x16x128xf32, #tpu.memory_space<vmem>>, vector<1x16x128xf32>,
    %133 = vector.extract_strided_slice %120 {offsets = [54, 0], sizes = [16, 128], strides = [1, 1]} : vector<70x128xf32> to vector<16x128xf32>
    %c3_124 = arith.constant 3 : index
    %c0_125 = arith.constant 0 : index
    %c0_126 = arith.constant 0 : index
    %134 = vector.load %arg7[%c3_124, %c0_125, %c0_126] : memref<4x16x128xf32, #tpu.memory_space<vmem>>, vector<1x16x128xf32>
    %135 = vector.shape_cast %134 : vector<1x16x128xf32> to vector<16x128xf32>
    %136 = vector.shape_cast %133 : vector<16x128xf32> to vector<1x16x128xf32>
    tpu.vector_store %arg7[%c3_124, %c0_125, %c0_126], %136 {strides = array<i32>} : memref<4x16x128xf32, #tpu.memory_space<vmem>>, vector<1x16x128xf32>,
    return
  }
  func.func @transform_0(%arg0: i32) -> (i32, i32, i32) {
    %c0_i32 = arith.constant 0 : i32
    %c0_i32_0 = arith.constant 0 : i32
    %c0_i32_1 = arith.constant 0 : i32
    return %arg0, %c0_i32, %c0_i32_0 : i32, i32, i32
  }
  func.func @transform_1(%arg0: i32) -> (i32, i32, i32) {
    %c0_i32 = arith.constant 0 : i32
    %c0_i32_0 = arith.constant 0 : i32
    %c0_i32_1 = arith.constant 0 : i32
    %c0_i32_2 = arith.constant 0 : i32
    return %c0_i32, %c0_i32_0, %c0_i32_1 : i32, i32, i32
  }
  func.func @transform_2(%arg0: i32) -> (i32, i32, i32) {
    %c0_i32 = arith.constant 0 : i32
    %c0_i32_0 = arith.constant 0 : i32
    %c0_i32_1 = arith.constant 0 : i32
    %c0_i32_2 = arith.constant 0 : i32
    return %c0_i32, %c0_i32_0, %c0_i32_1 : i32, i32, i32
  }
  func.func @transform_3(%arg0: i32) -> (i32, i32, i32) {
    %c0_i32 = arith.constant 0 : i32
    %c0_i32_0 = arith.constant 0 : i32
    %c0_i32_1 = arith.constant 0 : i32
    %c0_i32_2 = arith.constant 0 : i32
    return %c0_i32, %c0_i32_0, %c0_i32_1 : i32, i32, i32
  }
  func.func @transform_4(%arg0: i32) -> (i32, i32) {
    %c0_i32 = arith.constant 0 : i32
    %c0_i32_0 = arith.constant 0 : i32
    %c0_i32_1 = arith.constant 0 : i32
    return %c0_i32, %c0_i32_0 : i32, i32
  }
  func.func @transform_5(%arg0: i32) -> (i32, i32) {
    %c0_i32 = arith.constant 0 : i32
    %c0_i32_0 = arith.constant 0 : i32
    %c0_i32_1 = arith.constant 0 : i32
    return %c0_i32, %c0_i32_0 : i32, i32
  }
  func.func @transform_6(%arg0: i32) -> (i32, i32, i32) {
    %c0_i32 = arith.constant 0 : i32
    %c0_i32_0 = arith.constant 0 : i32
    %c0_i32_1 = arith.constant 0 : i32
    return %arg0, %c0_i32, %c0_i32_0 : i32, i32, i32
  }
}

</mosaic_0001>

<llo_original>
// kernel: fcconv3_forward.1
$region0: #{fcconv3_forward.1}
  #allocation0 [shape = 'u32[]', space=smem, size = 0x4, offset = 0x4, fixed_abs, tag = 'smem constant byte address 0x4 - core index']
  #allocation1 [shape = 'u32[144,128]{1,0:T(1,128)}', space=vmem, size = 0x12000, scoped, tag = 'internal scratch']
  #allocation2 [shape = 'f32[72,64]{1,0:T(8,128)}', space=vmem, size = 0x9000, scoped, tag = 'scratch operand']
  #allocation3 [shape = 'f32[72,128]{1,0:T(8,128)}', space=vmem, size = 0x9000, scoped, tag = 'scratch operand']
  %s0 = inlined_call_operand.vmem [shape: f32[8,16,64], index: 0, kind: input, shape index: {}]
  %s1 = inlined_call_operand.vmem [shape: f32[3,64,128], index: 1, kind: input, shape index: {}]
  %s2 = inlined_call_operand.vmem [shape: f32[3,128,128], index: 2, kind: input, shape index: {}]
  %s3 = inlined_call_operand.vmem [shape: f32[3,128,128], index: 3, kind: input, shape index: {}]
  %s4 = inlined_call_operand.vmem [shape: f32[3,128], index: 4, kind: input, shape index: {}]
  %s5 = inlined_call_operand.vmem [shape: f32[3,128], index: 5, kind: input, shape index: {}]
  %s6 = inlined_call_operand.vmem [shape: f32[8,16,128], index: 6, kind: output, shape index: {}]
  %s7 = sld [smem:[#allocation0]]
  $region57: #{fcconv3_forward.1} parent=0
    _
  %s9 = ssub.s32 1, %s7
  %s10 = scalar_select 0, %s9, %s7
  loop: start=0, step=1, limit=4
  $region2: #{fcconv3_forward.1} parent=0 // loop_pre_header
    _
  $region3: #{fcconv3_forward.1} parent=0 // loop_header
    %s12 = sphi 0, %s16
    %p13 = scmp.ge.s32.totalorder %s12, 4
    %s22 = sphi 0, %s24
    %s25 = sphi 0, %s22
    %s26 = sphi 0, %s25
    %s42 = sphi 0, %s26
    %s46 = sphi 0, %s46
    %s48 = sphi 0, %s46
    %s49 = sphi 0, %s48
    %s63 = sphi 0, %s49
    %s67 = sphi 0, %s67
    %s69 = sphi 0, %s67
    %s70 = sphi 0, %s69
    %s84 = sphi 0, %s70
    %s88 = sphi 0, %s88
    %s90 = sphi 0, %s88
    %s91 = sphi 0, %s90
    %s105 = sphi 0, %s91
    %s109 = sphi 0, %s109
    %s111 = sphi 0, %s109
    %s112 = sphi 0, %s111
    %s126 = sphi 0, %s112
    %s130 = sphi 0, %s130
    %s132 = sphi 0, %s130
    %s133 = sphi 0, %s132
    %s147 = sphi 0, %s133
    %s153 = sphi 0, %s155
    %s156 = sphi 0, %s153
    %s157 = sphi 0, %s156
    %s173 = sphi 0, %s157
  $region4: #{fcconv3_forward.1} parent=0 // loop_header_branch
    %15 = sbr.rel (%p13) target = $region8
  $region5: #{fcconv3_forward.1} parent=0 // loop_body
    %s17 = ssub.s32 %s12, 1
    %s18 = ssub.s32 %s12, 2
    %s19 = sadd.s32 %s12, 1
    %s20 = ssub.s32 %s12, %s19
    %p21 = scmp.eq.s32.totalorder %s20, 0
    %s23 = sadd.s32 %s22, 1
    %s24 = scalar_select %p21, %s22, %s23
    %p27 = pneg %p21
    %p28 = scmp.eq.s32.totalorder %s12, 1
    %p29 = por %p27, %p28
    %p30 = scmp.ne.s32.totalorder %s22, %s25
    %p31 = scmp.eq.s32.totalorder %s12, 0
    %p32 = por %p30, %p31
    %p33 = scmp.ne.s32.totalorder %s22, %s25
    %p34 = scmp.eq.s32.totalorder %s17, 1
    %p35 = por %p33, %p34
    %p36 = scmp.ne.s32.totalorder %s25, %s26
    %p37 = scmp.eq.s32.totalorder %s17, 0
    %p38 = por %p36, %p37
    %p39 = scmp.ne.s32.totalorder %s25, %s26
    %p40 = scmp.eq.s32.totalorder %s18, 1
    %p41 = por %p39, %p40
    %p43 = scmp.ne.s32.totalorder %s26, %s42
    %p44 = scmp.eq.s32.totalorder %s18, 0
    %p45 = por %p43, %p44
    %s47 = sadd.s32 %s46, 1
    %p50 = scmp.eq.s32.totalorder %s12, 1
    %p51 = scmp.ne.s32.totalorder %s46, %s48
    %p52 = scmp.eq.s32.totalorder %s12, 0
    %p53 = por %p51, %p52
    %p54 = scmp.ne.s32.totalorder %s46, %s48
    %p55 = scmp.eq.s32.totalorder %s17, 1
    %p56 = por %p54, %p55
    %p57 = scmp.ne.s32.totalorder %s48, %s49
    %p58 = scmp.eq.s32.totalorder %s17, 0
    %p59 = por %p57, %p58
    %p60 = scmp.ne.s32.totalorder %s48, %s49
    %p61 = scmp.eq.s32.totalorder %s18, 1
    %p62 = por %p60, %p61
    %p64 = scmp.ne.s32.totalorder %s49, %s63
    %p65 = scmp.eq.s32.totalorder %s18, 0
    %p66 = por %p64, %p65
    %s68 = sadd.s32 %s67, 1
    %p71 = scmp.eq.s32.totalorder %s12, 1
    %p72 = scmp.ne.s32.totalorder %s67, %s69
    %p73 = scmp.eq.s32.totalorder %s12, 0
    %p74 = por %p72, %p73
    %p75 = scmp.ne.s32.totalorder %s67, %s69
    %p76 = scmp.eq.s32.totalorder %s17, 1
    %p77 = por %p75, %p76
    %p78 = scmp.ne.s32.totalorder %s69, %s70
    %p79 = scmp.eq.s32.totalorder %s17, 0
    %p80 = por %p78, %p79
    %p81 = scmp.ne.s32.totalorder %s69, %s70
    %p82 = scmp.eq.s32.totalorder %s18, 1
    %p83 = por %p81, %p82
    %p85 = scmp.ne.s32.totalorder %s70, %s84
    %p86 = scmp.eq.s32.totalorder %s18, 0
    %p87 = por %p85, %p86
    %s89 = sadd.s32 %s88, 1
    %p92 = scmp.eq.s32.totalorder %s12, 1
    %p93 = scmp.ne.s32.totalorder %s88, %s90
    %p94 = scmp.eq.s32.totalorder %s12, 0
    %p95 = por %p93, %p94
    %p96 = scmp.ne.s32.totalorder %s88, %s90
    %p97 = scmp.eq.s32.totalorder %s17, 1
    %p98 = por %p96, %p97
    %p99 = scmp.ne.s32.totalorder %s90, %s91
    %p100 = scmp.eq.s32.totalorder %s17, 0
    %p101 = por %p99, %p100
    %p102 = scmp.ne.s32.totalorder %s90, %s91
    %p103 = scmp.eq.s32.totalorder %s18, 1
    %p104 = por %p102, %p103
    %p106 = scmp.ne.s32.totalorder %s91, %s105
    %p107 = scmp.eq.s32.totalorder %s18, 0
    %p108 = por %p106, %p107
    %s110 = sadd.s32 %s109, 1
    %p113 = scmp.eq.s32.totalorder %s12, 1
    %p114 = scmp.ne.s32.totalorder %s109, %s111
    %p115 = scmp.eq.s32.totalorder %s12, 0
    %p116 = por %p114, %p115
    %p117 = scmp.ne.s32.totalorder %s109, %s111
    %p118 = scmp.eq.s32.totalorder %s17, 1
    %p119 = por %p117, %p118
    %p120 = scmp.ne.s32.totalorder %s111, %s112
    %p121 = scmp.eq.s32.totalorder %s17, 0
    %p122 = por %p120, %p121
    %p123 = scmp.ne.s32.totalorder %s111, %s112
    %p124 = scmp.eq.s32.totalorder %s18, 1
    %p125 = por %p123, %p124
    %p127 = scmp.ne.s32.totalorder %s112, %s126
    %p128 = scmp.eq.s32.totalorder %s18, 0
    %p129 = por %p127, %p128
    %s131 = sadd.s32 %s130, 1
    %p134 = scmp.eq.s32.totalorder %s12, 1
    %p135 = scmp.ne.s32.totalorder %s130, %s132
    %p136 = scmp.eq.s32.totalorder %s12, 0
    %p137 = por %p135, %p136
    %p138 = scmp.ne.s32.totalorder %s130, %s132
    %p139 = scmp.eq.s32.totalorder %s17, 1
    %p140 = por %p138, %p139
    %p141 = scmp.ne.s32.totalorder %s132, %s133
    %p142 = scmp.eq.s32.totalorder %s17, 0
    %p143 = por %p141, %p142
    %p144 = scmp.ne.s32.totalorder %s132, %s133
    %p145 = scmp.eq.s32.totalorder %s18, 1
    %p146 = por %p144, %p145
    %p148 = scmp.ne.s32.totalorder %s133, %s147
    %p149 = scmp.eq.s32.totalorder %s18, 0
    %p150 = por %p148, %p149
    %s151 = ssub.s32 %s12, %s19
    %p152 = scmp.eq.s32.totalorder %s151, 0
    %s154 = sadd.s32 %s153, 1
    %s155 = scalar_select %p152, %s153, %s154
    %p158 = pneg %p152
    %p159 = scmp.eq.s32.totalorder %s12, 1
    %p160 = por %p158, %p159
    %p161 = scmp.ne.s32.totalorder %s153, %s156
    %p162 = scmp.eq.s32.totalorder %s12, 0
    %p163 = por %p161, %p162
    %p164 = scmp.ne.s32.totalorder %s153, %s156
    %p165 = scmp.eq.s32.totalorder %s17, 1
    %p166 = por %p164, %p165
    %p167 = scmp.ne.s32.totalorder %s156, %s157
    %p168 = scmp.eq.s32.totalorder %s17, 0
    %p169 = por %p167, %p168
    %p170 = scmp.ne.s32.totalorder %s156, %s157
    %p171 = scmp.eq.s32.totalorder %s18, 1
    %p172 = por %p170, %p171
    %p174 = scmp.ne.s32.totalorder %s157, %s173
    %p175 = scmp.eq.s32.totalorder %s18, 0
    %p176 = por %p174, %p175
    %p177 = scmp.le.s32.totalorder 1, %s12
    %p178 = scmp.lt.s32.totalorder %s12, 3
    %p179 = pnand %p177, %p178
    %p180 = pneg %p179
    // Predicated region
    $region9: #{fcconv3_forward.1} parent=5 // pred_check
      _
    $region10: #{fcconv3_forward.1} parent=5 // pred_check_branch
      %182 = sbr.rel (%p179) target = $region12
    $region11: #{fcconv3_forward.1} parent=5 // pred_region
      %s183 = ssub.s32 %s12, 1
      // Predicated region
      $region13: #{fcconv3_forward.1} parent=11 // pred_check
        %p184 = pneg %p59
      $region14: #{fcconv3_forward.1} parent=11 // pred_check_branch
        %186 = sbr.rel (%p184) target = $region16
      $region15: #{fcconv3_forward.1} parent=11 // pred_region
        _
      $region16: #{fcconv3_forward.1} parent=11 // pred_fallthru
        _
      // Predicated region
      $region17: #{fcconv3_forward.1} parent=11 // pred_check
        %p187 = pneg %p80
      $region18: #{fcconv3_forward.1} parent=11 // pred_check_branch
        %189 = sbr.rel (%p187) target = $region20
      $region19: #{fcconv3_forward.1} parent=11 // pred_region
        _
      $region20: #{fcconv3_forward.1} parent=11 // pred_fallthru
        _
      // Predicated region
      $region21: #{fcconv3_forward.1} parent=11 // pred_check
        %p190 = pneg %p101
      $region22: #{fcconv3_forward.1} parent=11 // pred_check_branch
        %192 = sbr.rel (%p190) target = $region24
      $region23: #{fcconv3_forward.1} parent=11 // pred_region
        _
      $region24: #{fcconv3_forward.1} parent=11 // pred_fallthru
        _
      // Predicated region
      $region25: #{fcconv3_forward.1} parent=11 // pred_check
        %p193 = pneg %p122
      $region26: #{fcconv3_forward.1} parent=11 // pred_check_branch
        %195 = sbr.rel (%p193) target = $region28
      $region27: #{fcconv3_forward.1} parent=11 // pred_region
        _
      $region28: #{fcconv3_forward.1} parent=11 // pred_fallthru
        _
      // Predicated region
      $region29: #{fcconv3_forward.1} parent=11 // pred_check
        %p196 = pneg %p143
      $region30: #{fcconv3_forward.1} parent=11 // pred_check_branch
        %198 = sbr.rel (%p196) target = $region32
      $region31: #{fcconv3_forward.1} parent=11 // pred_region
        _
      $region32: #{fcconv3_forward.1} parent=11 // pred_fallthru
        _
    $region12: #{fcconv3_forward.1} parent=5 // pred_fallthru
      _
    %p199 = scmp.lt.s32.totalorder %s12, 2
    // Predicated region
    $region33: #{fcconv3_forward.1} parent=5 // pred_check
      %p200 = pneg %p199
    $region34: #{fcconv3_forward.1} parent=5 // pred_check_branch
      %202 = sbr.rel (%p200) target = $region36
    $region35: #{fcconv3_forward.1} parent=5 // pred_region
      // Predicated region
      $region37: #{fcconv3_forward.1} parent=35 // pred_check
        %p203 = pneg %p32
      $region38: #{fcconv3_forward.1} parent=35 // pred_check_branch
        %205 = sbr.rel (%p203) target = $region40
      $region39: #{fcconv3_forward.1} parent=35 // pred_region
        %s206 = smul.u32 4, %s12
        %p207 = scmp.lt.s32.totalorder %s206, 7
        %s208 = scalar_select %p207, %s206, 7
        %s209 = smul.addr %s208, 2
        %s210 = smul.addr %s209, 8
        %s211 = scalar_lea.vmem %s0, %s210
        %s212 = smul.u32 4, %s12
      $region40: #{fcconv3_forward.1} parent=35 // pred_fallthru
        _
    $region36: #{fcconv3_forward.1} parent=5 // pred_fallthru
      _
    %p213 = scmp.le.s32.totalorder 1, %s12
    %p214 = scmp.lt.s32.totalorder %s12, 3
    %p215 = pnand %p213, %p214
    %p216 = pneg %p215
    // Predicated region
    $region41: #{fcconv3_forward.1} parent=5 // pred_check
      _
    $region42: #{fcconv3_forward.1} parent=5 // pred_check_branch
      %218 = sbr.rel (%p215) target = $region44
    $region43: #{fcconv3_forward.1} parent=5 // pred_region
      %s219 = ssub.s32 %s12, 1
      %s220 = smul.u32 4, %s17
      %p221 = scmp.lt.s32.totalorder %s220, 7
      %s222 = scalar_select %p221, %s220, 7
      %s223 = smul.addr %s222, 2
      %s224 = smul.addr %s223, 8
      %s225 = scalar_lea.vmem %s0, %s224
      %p226 = pneg %p38
      %p227 = pneg %p35
      %p228 = pneg %p59
      %p229 = pneg %p56
      %p230 = pneg %p80
      %p231 = pneg %p77
      %p232 = pneg %p101
      %p233 = pneg %p98
      %p234 = pneg %p122
      %p235 = pneg %p119
      %p236 = pneg %p143
      %p237 = pneg %p140
      %p238 = pneg %p169
      %p239 = pneg %p166
      %s240 = smul.u32 4, %s17
      %p241 = scmp.lt.s32.totalorder %s240, 7
      %s242 = scalar_select %p241, %s240, 7
      %s243 = smul.addr %s242, 2
      %s244 = smul.addr %s243, 8
      %s245 = scalar_lea.vmem %s6, %s244
      %s246 = smul.u32 4, %s17
      %p247 = scmp.lt.s32.totalorder %s246, 7
      %s248 = scalar_select %p247, %s246, 7
      %s249 = smul.addr %s248, 2
      %s250 = smul.addr %s249, 8
      %s251 = scalar_lea.vmem %s0, %s250
      %s252 = smul.u32 4, %s17
      %s253 = smul.u32 4, %s17
      %p254 = scmp.lt.s32.totalorder %s253, 7
      %s255 = scalar_select %p254, %s253, 7
      %s256 = smul.addr %s255, 2
      %s257 = smul.addr %s256, 8
      %s258 = scalar_lea.vmem %s6, %s257
      %s259 = smul.u32 4, %s17
      %vm260 = vcmask 516096
      %261 = vst.msk [vmem:[#allocation2] sm:$0x1] %vm260, 0.0
      %262 = vst.msk [vmem:[#allocation2 + $0x11] sm:$0x1] %vm260, 0.0
      %263 = vst [vmem:[#allocation3] sm:$0x1] 0.0
      %264 = vst [vmem:[#allocation3 + $0x11] sm:$0x1] 0.0
      %265 = vst.msk [vmem:[#allocation2 + $0x12] sm:$0x1] %vm260, 0.0
      %266 = vst.msk [vmem:[#allocation2 + $0x23] sm:$0x1] %vm260, 0.0
      %267 = vst [vmem:[#allocation3 + $0x12] sm:$0x1] 0.0
      %268 = vst [vmem:[#allocation3 + $0x23] sm:$0x1] 0.0
      %269 = vst.msk [vmem:[#allocation2 + $0x24] sm:$0x1] %vm260, 0.0
      %270 = vst.msk [vmem:[#allocation2 + $0x35] sm:$0x1] %vm260, 0.0
      %271 = vst [vmem:[#allocation3 + $0x24] sm:$0x1] 0.0
      %272 = vst [vmem:[#allocation3 + $0x35] sm:$0x1] 0.0
      %273 = vst.msk [vmem:[#allocation2 + $0x36] sm:$0x1] %vm260, 0.0
      %274 = vst.msk [vmem:[#allocation2 + $0x47] sm:$0x1] %vm260, 0.0
      %275 = vst [vmem:[#allocation3 + $0x36] sm:$0x1] 0.0
      %276 = vst [vmem:[#allocation3 + $0x47] sm:$0x1] 0.0
      %v277 = vld [vmem:[%s251] sm:$0xff]
      %v278 = vld [vmem:[%s251 + $0x8] sm:$0xff]
      %vm279 = vcmask 523264
      %280 = vst.msk [vmem:[#allocation2 + $0x1] sm:$0xff] %vm279, %v277
      %281 = vst.msk [vmem:[#allocation2 + $0x9] sm:$0xff] %vm279, %v278
      %s282 = scalar_lea.vmem %s251, 16
      %v283 = vld [vmem:[%s282] sm:$0xff]
      %v284 = vld [vmem:[%s282 + $0x8] sm:$0xff]
      %285 = vst.msk [vmem:[#allocation2 + $0x13] sm:$0xff] %vm279, %v283
      %286 = vst.msk [vmem:[#allocation2 + $0x1b] sm:$0xff] %vm279, %v284
      %s287 = scalar_lea.vmem %s251, 32
      %v288 = vld [vmem:[%s287] sm:$0xff]
      %v289 = vld [vmem:[%s287 + $0x8] sm:$0xff]
      %290 = vst.msk [vmem:[#allocation2 + $0x25] sm:$0xff] %vm279, %v288
      %291 = vst.msk [vmem:[#allocation2 + $0x2d] sm:$0xff] %vm279, %v289
      %s292 = scalar_lea.vmem %s251, 48
      %v293 = vld [vmem:[%s292] sm:$0xff]
      %v294 = vld [vmem:[%s292 + $0x8] sm:$0xff]
      %295 = vst.msk [vmem:[#allocation2 + $0x37] sm:$0xff] %vm279, %v293
      %296 = vst.msk [vmem:[#allocation2 + $0x3f] sm:$0xff] %vm279, %v294
      %v297 = vld [vmem:[#allocation2] sm:$0xff]
      %v298 = vld [vmem:[#allocation2 + $0x8] sm:$0xff]
      %v299 = vld [vmem:[#allocation2 + $0x10] sm:$0xff]
      %v300 = vld [vmem:[#allocation2 + $0x18] sm:$0xff]
      %v301 = vld [vmem:[#allocation2 + $0x20] sm:$0xff]
      %v302 = vld [vmem:[#allocation2 + $0x28] sm:$0xff]
      %v303 = vld [vmem:[#allocation2 + $0x30] sm:$0xff]
      %v304 = vld [vmem:[#allocation2 + $0x38] sm:$0xff]
      %v305 = vld [vmem:[#allocation2 + $0x40] sm:$0xff]
      %v306 = vld [vmem:[%s1] sm:$0xff]
      %v307 = vld [vmem:[%s1 + $0x8] sm:$0xff]
      %v308 = vld [vmem:[%s1 + $0x10] sm:$0xff]
      %v309 = vld [vmem:[%s1 + $0x18] sm:$0xff]
      %v310 = vld [vmem:[%s1 + $0x20] sm:$0xff]
      %v311 = vld [vmem:[%s1 + $0x28] sm:$0xff]
      %v312 = vld [vmem:[%s1 + $0x30] sm:$0xff]
      %v313 = vld [vmem:[%s1 + $0x38] sm:$0xff]
      %s314 = scalar_lea.vmem %s1, 64
      %v315 = vld [vmem:[%s314] sm:$0xff]
      %v316 = vld [vmem:[%s314 + $0x8] sm:$0xff]
      %v317 = vld [vmem:[%s314 + $0x10] sm:$0xff]
      %v318 = vld [vmem:[%s314 + $0x18] sm:$0xff]
      %v319 = vld [vmem:[%s314 + $0x20] sm:$0xff]
      %v320 = vld [vmem:[%s314 + $0x28] sm:$0xff]
      %v321 = vld [vmem:[%s314 + $0x30] sm:$0xff]
      %v322 = vld [vmem:[%s314 + $0x38] sm:$0xff]
      %vm332 = vcmask 1046528
      %v333 = vrot.slane %v297, 1
      %v334 = vrot.slane %v298, 1
      %v335 = vsel %vm332, %v333, %v334
      %v336 = vrot.slane %v299, 1
      %v337 = vsel %vm332, %v334, %v336
      %v338 = vrot.slane %v300, 1
      %v339 = vsel %vm332, %v336, %v338
      %v340 = vrot.slane %v301, 1
      %v341 = vsel %vm332, %v338, %v340
      %v342 = vrot.slane %v302, 1
      %v343 = vsel %vm332, %v340, %v342
      %v344 = vrot.slane %v303, 1
      %v345 = vsel %vm332, %v342, %v344
      %v346 = vrot.slane %v304, 1
      %v347 = vsel %vm332, %v344, %v346
      %v348 = vrot.slane %v305, 1
      %v349 = vsel %vm332, %v346, %v348
      %v350 = vsel %vm279, %v335, 0
      %v352 = vsel %vm279, %v337, 0
      %v354 = vsel %vm279, %v339, 0
      %v356 = vsel %vm279, %v341, 0
      %v358 = vsel %vm279, %v343, 0
      %v360 = vsel %vm279, %v345, 0
      %v362 = vsel %vm279, %v347, 0
      %v364 = vsel %vm279, %v349, 0
      %v366 = vsel %vm279, %v348, 0
      %368 = vmatprep.subr.mxu0 0.0
      %369 = vmatpush1.msra.mxu0 %v315
      %370 = vmatprep.subr.mxu0 0.0
      %371 = vmatpush1.msra.mxu0 %v316
      %372 = vmatprep.subr.mxu0 0.0
      %373 = vmatpush1.msra.mxu0 %v317
      %374 = vmatprep.subr.mxu0 0.0
      %375 = vmatpush1.msra.mxu0 %v318
      %376 = vmatprep.subr.mxu0 0.0
      %377 = vmatpush1.msra.mxu0 %v319
      %378 = vmatprep.subr.mxu0 0.0
      %379 = vmatpush1.msra.mxu0 %v320
      %380 = vmatprep.subr.mxu0 0.0
      %381 = vmatpush1.msra.mxu0 %v321
      %382 = vmatprep.subr.mxu0 0.0
      %383 = vmatpush1.msra.mxu0 %v322
      %384 = vmatprep.subr.mxu0 0.0
      %385 = vmatpush1.msra.mxu0 0.0
      %386 = vmatprep.subr.mxu0 0.0
      %387 = vmatpush1.msra.mxu0 0.0
      %388 = vmatprep.subr.mxu0 0.0
      %389 = vmatpush1.msra.mxu0 0.0
      %390 = vmatprep.subr.mxu0 0.0
      %391 = vmatpush1.msra.mxu0 0.0
      %392 = vmatprep.subr.mxu0 0.0
      %393 = vmatpush1.msra.mxu0 0.0
      %394 = vmatprep.subr.mxu0 0.0
      %395 = vmatpush1.msra.mxu0 0.0
      %396 = vmatprep.subr.mxu0 0.0
      %397 = vmatpush1.msra.mxu0 0.0
      %398 = vmatprep.subr.mxu0 0.0
      %399 = vmatpush1.msra.mxu0 0.0
      %400 = vmatprep.subr.mxu0 0.0
      %401 = vmatpush1.msra.mxu0 0.0
      %402 = vmatprep.subr.mxu0 0.0
      %403 = vmatpush1.msra.mxu0 0.0
      %404 = vmatprep.subr.mxu0 0.0
      %405 = vmatpush1.msra.mxu0 0.0
      %406 = vmatprep.subr.mxu0 0.0
      %407 = vmatpush1.msra.mxu0 0.0
      %408 = vmatprep.subr.mxu0 0.0
      %409 = vmatpush1.msra.mxu0 0.0
      %410 = vmatprep.subr.mxu0 0.0
      %411 = vmatpush1.msra.mxu0 0.0
      %412 = vmatprep.subr.mxu0 0.0
      %413 = vmatpush1.msra.mxu0 0.0
      %414 = vmatprep.subr.mxu0 0.0
      %415 = vmatpush1.msra.mxu0 0.0
      %416 = vmatprep.subr.mxu0 0.0
      %417 = vmatpush1.msra.mxu0 0.0
      %418 = vmatprep.subr.mxu0 0.0
      %419 = vmatpush1.msra.mxu0 0.0
      %420 = vmatprep.subr.mxu0 0.0
      %421 = vmatpush1.msra.mxu0 0.0
      %422 = vmatprep.subr.mxu0 0.0
      %423 = vmatpush1.msra.mxu0 0.0
      %424 = vmatprep.subr.mxu0 0.0
      %425 = vmatpush1.msra.mxu0 0.0
      %426 = vmatprep.subr.mxu0 0.0
      %427 = vmatpush1.msra.mxu0 0.0
      %428 = vmatprep.subr.mxu0 0.0
      %429 = vmatpush1.msra.mxu0 0.0
      %430 = vmatprep.subr.mxu0 0.0
      %431 = vmatpush1.msra.mxu0 0.0
      %432 = vmatprep.mubr.f32.mxu0 0.0
      %433 = vmatmul.mubr.f32.gmra.mrb[0].mxu0 %v350
      %v434 = vpop.f32.mrb[0].mxu0
      %v435 = vadd.f32 0.0, %v434
      %v436 = vpop.f32.mrb[0].mxu0
      %437 = vmatprep.mubr.f32.mxu0 0.0
      %438 = vmatmul.mubr.f32.gmra.mrb[0].mxu0 %v352
      %v439 = vpop.f32.mrb[0].mxu0
      %v440 = vadd.f32 0.0, %v439
      %v441 = vpop.f32.mrb[0].mxu0
      %442 = vmatprep.mubr.f32.mxu0 0.0
      %443 = vmatmul.mubr.f32.gmra.mrb[0].mxu0 %v354
      %v444 = vpop.f32.mrb[0].mxu0
      %v445 = vadd.f32 0.0, %v444
      %v446 = vpop.f32.mrb[0].mxu0
      %447 = vmatprep.mubr.f32.mxu0 0.0
      %448 = vmatmul.mubr.f32.gmra.mrb[0].mxu0 %v356
      %v449 = vpop.f32.mrb[0].mxu0
      %v450 = vadd.f32 0.0, %v449
      %v451 = vpop.f32.mrb[0].mxu0
      %452 = vmatprep.mubr.f32.mxu0 0.0
      %453 = vmatmul.mubr.f32.gmra.mrb[0].mxu0 %v358
      %v454 = vpop.f32.mrb[0].mxu0
      %v455 = vadd.f32 0.0, %v454
      %v456 = vpop.f32.mrb[0].mxu0
      %457 = vmatprep.mubr.f32.mxu0 0.0
      %458 = vmatmul.mubr.f32.gmra.mrb[0].mxu0 %v360
      %v459 = vpop.f32.mrb[0].mxu0
      %v460 = vadd.f32 0.0, %v459
      %v461 = vpop.f32.mrb[0].mxu0
      %462 = vmatprep.mubr.f32.mxu0 0.0
      %463 = vmatmul.mubr.f32.gmra.mrb[0].mxu0 %v362
      %v464 = vpop.f32.mrb[0].mxu0
      %v465 = vadd.f32 0.0, %v464
      %v466 = vpop.f32.mrb[0].mxu0
      %467 = vmatprep.mubr.f32.mxu0 0.0
      %468 = vmatmul.mubr.f32.gmra.mrb[0].mxu0 %v364
      %v469 = vpop.f32.mrb[0].mxu0
      %v470 = vadd.f32 0.0, %v469
      %v471 = vpop.f32.mrb[0].mxu0
      %472 = vmatprep.mubr.f32.mxu0 0.0
      %473 = vmatmul.mubr.f32.gmra.mrb[0].mxu0 %v366
      %v474 = vpop.f32.mrb[0].mxu0
      %v475 = vadd.f32 0.0, %v474
      %v476 = vpop.f32.mrb[0].mxu0
      %477 = vdwg.mxu0
      %v478 = vsel %vm279, %v297, 0
      %v480 = vsel %vm279, %v298, 0
      %v482 = vsel %vm279, %v299, 0
      %v484 = vsel %vm279, %v300, 0
      %v486 = vsel %vm279, %v301, 0
      %v488 = vsel %vm279, %v302, 0
      %v490 = vsel %vm279, %v303, 0
      %v492 = vsel %vm279, %v304, 0
      %v494 = vsel %vm279, %v305, 0
      %496 = vmatprep.subr.mxu0 0.0
      %497 = vmatpush1.msra.mxu0 %v306
      %498 = vmatprep.subr.mxu0 0.0
      %499 = vmatpush1.msra.mxu0 %v307
      %500 = vmatprep.subr.mxu0 0.0
      %501 = vmatpush1.msra.mxu0 %v308
      %502 = vmatprep.subr.mxu0 0.0
      %503 = vmatpush1.msra.mxu0 %v309
      %504 = vmatprep.subr.mxu0 0.0
      %505 = vmatpush1.msra.mxu0 %v310
      %506 = vmatprep.subr.mxu0 0.0
      %507 = vmatpush1.msra.mxu0 %v311
      %508 = vmatprep.subr.mxu0 0.0
      %509 = vmatpush1.msra.mxu0 %v312
      %510 = vmatprep.subr.mxu0 0.0
      %511 = vmatpush1.msra.mxu0 %v313
      %512 = vmatprep.subr.mxu0 0.0
      %513 = vmatpush1.msra.mxu0 0.0
      %514 = vmatprep.subr.mxu0 0.0
      %515 = vmatpush1.msra.mxu0 0.0
      %516 = vmatprep.subr.mxu0 0.0
      %517 = vmatpush1.msra.mxu0 0.0
      %518 = vmatprep.subr.mxu0 0.0
      %519 = vmatpush1.msra.mxu0 0.0
      %520 = vmatprep.subr.mxu0 0.0
      %521 = vmatpush1.msra.mxu0 0.0
      %522 = vmatprep.subr.mxu0 0.0
      %523 = vmatpush1.msra.mxu0 0.0
      %524 = vmatprep.subr.mxu0 0.0
      %525 = vmatpush1.msra.mxu0 0.0
      %526 = vmatprep.subr.mxu0 0.0
      %527 = vmatpush1.msra.mxu0 0.0
      %528 = vmatprep.subr.mxu0 0.0
      %529 = vmatpush1.msra.mxu0 0.0
      %530 = vmatprep.subr.mxu0 0.0
      %531 = vmatpush1.msra.mxu0 0.0
      %532 = vmatprep.subr.mxu0 0.0
      %533 = vmatpush1.msra.mxu0 0.0
      %534 = vmatprep.subr.mxu0 0.0
      %535 = vmatpush1.msra.mxu0 0.0
      %536 = vmatprep.subr.mxu0 0.0
      %537 = vmatpush1.msra.mxu0 0.0
      %538 = vmatprep.subr.mxu0 0.0
      %539 = vmatpush1.msra.mxu0 0.0
      %540 = vmatprep.subr.mxu0 0.0
      %541 = vmatpush1.msra.mxu0 0.0
      %542 = vmatprep.subr.mxu0 0.0
      %543 = vmatpush1.msra.mxu0 0.0
      %544 = vmatprep.subr.mxu0 0.0
      %545 = vmatpush1.msra.mxu0 0.0
      %546 = vmatprep.subr.mxu0 0.0
      %547 = vmatpush1.msra.mxu0 0.0
      %548 = vmatprep.subr.mxu0 0.0
      %549 = vmatpush1.msra.mxu0 0.0
      %550 = vmatprep.subr.mxu0 0.0
      %551 = vmatpush1.msra.mxu0 0.0
      %552 = vmatprep.subr.mxu0 0.0
      %553 = vmatpush1.msra.mxu0 0.0
      %554 = vmatprep.subr.mxu0 0.0
      %555 = vmatpush1.msra.mxu0 0.0
      %556 = vmatprep.subr.mxu0 0.0
      %557 = vmatpush1.msra.mxu0 0.0
      %558 = vmatprep.subr.mxu0 0.0
      %559 = vmatpush1.msra.mxu0 0.0
      %560 = vmatprep.mubr.f32.mxu0 0.0
      %561 = vmatmul.mubr.f32.gmra.mrb[0].mxu0 %v478
      %v562 = vpop.f32.mrb[0].mxu0
      %v563 = vadd.f32 %v435, %v562
      %v564 = vpop.f32.mrb[0].mxu0
      %565 = vmatprep.mubr.f32.mxu0 0.0
      %566 = vmatmul.mubr.f32.gmra.mrb[0].mxu0 %v480
      %v567 = vpop.f32.mrb[0].mxu0
      %v568 = vadd.f32 %v440, %v567
      %v569 = vpop.f32.mrb[0].mxu0
      %570 = vmatprep.mubr.f32.mxu0 0.0
      %571 = vmatmul.mubr.f32.gmra.mrb[0].mxu0 %v482
      %v572 = vpop.f32.mrb[0].mxu0
      %v573 = vadd.f32 %v445, %v572
      %v574 = vpop.f32.mrb[0].mxu0
      %575 = vmatprep.mubr.f32.mxu0 0.0
      %576 = vmatmul.mubr.f32.gmra.mrb[0].mxu0 %v484
      %v577 = vpop.f32.mrb[0].mxu0
      %v578 = vadd.f32 %v450, %v577
      %v579 = vpop.f32.mrb[0].mxu0
      %580 = vmatprep.mubr.f32.mxu0 0.0
      %581 = vmatmul.mubr.f32.gmra.mrb[0].mxu0 %v486
      %v582 = vpop.f32.mrb[0].mxu0
      %v583 = vadd.f32 %v455, %v582
      %v584 = vpop.f32.mrb[0].mxu0
      %585 = vmatprep.mubr.f32.mxu0 0.0
      %586 = vmatmul.mubr.f32.gmra.mrb[0].mxu0 %v488
      %v587 = vpop.f32.mrb[0].mxu0
      %v588 = vadd.f32 %v460, %v587
      %v589 = vpop.f32.mrb[0].mxu0
      %590 = vmatprep.mubr.f32.mxu0 0.0
      %591 = vmatmul.mubr.f32.gmra.mrb[0].mxu0 %v490
      %v592 = vpop.f32.mrb[0].mxu0
      %v593 = vadd.f32 %v465, %v592
      %v594 = vpop.f32.mrb[0].mxu0
      %595 = vmatprep.mubr.f32.mxu0 0.0
      %596 = vmatmul.mubr.f32.gmra.mrb[0].mxu0 %v492
      %v597 = vpop.f32.mrb[0].mxu0
      %v598 = vadd.f32 %v470, %v597
      %v599 = vpop.f32.mrb[0].mxu0
      %600 = vmatprep.mubr.f32.mxu0 0.0
      %601 = vmatmul.mubr.f32.gmra.mrb[0].mxu0 %v494
      %v602 = vpop.f32.mrb[0].mxu0
      %v603 = vadd.f32 %v475, %v602
      %v604 = vpop.f32.mrb[0].mxu0
      %605 = vdwg.mxu0
      %s606 = scalar_lea.vmem %s1, 128
      %v607 = vld [vmem:[%s606] sm:$0xff]
      %v608 = vld [vmem:[%s606 + $0x8] sm:$0xff]
      %v609 = vld [vmem:[%s606 + $0x10] sm:$0xff]
      %v610 = vld [vmem:[%s606 + $0x18] sm:$0xff]
      %v611 = vld [vmem:[%s606 + $0x20] sm:$0xff]
      %v612 = vld [vmem:[%s606 + $0x28] sm:$0xff]
      %v613 = vld [vmem:[%s606 + $0x30] sm:$0xff]
      %v614 = vld [vmem:[%s606 + $0x38] sm:$0xff]
      %vm615 = vcmask 1045504
      %v616 = vrot.slane %v297, 2
      %v617 = vrot.slane %v298, 2
      %v618 = vsel %vm615, %v616, %v617
      %v619 = vrot.slane %v299, 2
      %v620 = vsel %vm615, %v617, %v619
      %v621 = vrot.slane %v300, 2
      %v622 = vsel %vm615, %v619, %v621
      %v623 = vrot.slane %v301, 2
      %v624 = vsel %vm615, %v621, %v623
      %v625 = vrot.slane %v302, 2
      %v626 = vsel %vm615, %v623, %v625
      %v627 = vrot.slane %v303, 2
      %v628 = vsel %vm615, %v625, %v627
      %v629 = vrot.slane %v304, 2
      %v630 = vsel %vm615, %v627, %v629
      %v631 = vrot.slane %v305, 2
      %v632 = vsel %vm615, %v629, %v631
      %v633 = vsel %vm279, %v618, 0
      %v635 = vsel %vm279, %v620, 0
      %v637 = vsel %vm279, %v622, 0
      %v639 = vsel %vm279, %v624, 0
      %v641 = vsel %vm279, %v626, 0
      %v643 = vsel %vm279, %v628, 0
      %v645 = vsel %vm279, %v630, 0
      %v647 = vsel %vm279, %v632, 0
      %v649 = vsel %vm279, %v631, 0
      %651 = vmatprep.subr.mxu0 0.0
      %652 = vmatpush1.msra.mxu0 %v607
      %653 = vmatprep.subr.mxu0 0.0
      %654 = vmatpush1.msra.mxu0 %v608
      %655 = vmatprep.subr.mxu0 0.0
      %656 = vmatpush1.msra.mxu0 %v609
      %657 = vmatprep.subr.mxu0 0.0
      %658 = vmatpush1.msra.mxu0 %v610
      %659 = vmatprep.subr.mxu0 0.0
      %660 = vmatpush1.msra.mxu0 %v611
      %661 = vmatprep.subr.mxu0 0.0
      %662 = vmatpush1.msra.mxu0 %v612
      %663 = vmatprep.subr.mxu0 0.0
      %664 = vmatpush1.msra.mxu0 %v613
      %665 = vmatprep.subr.mxu0 0.0
      %666 = vmatpush1.msra.mxu0 %v614
      %667 = vmatprep.subr.mxu0 0.0
      %668 = vmatpush1.msra.mxu0 0.0
      %669 = vmatprep.subr.mxu0 0.0
      %670 = vmatpush1.msra.mxu0 0.0
      %671 = vmatprep.subr.mxu0 0.0
      %672 = vmatpush1.msra.mxu0 0.0
      %673 = vmatprep.subr.mxu0 0.0
      %674 = vmatpush1.msra.mxu0 0.0
      %675 = vmatprep.subr.mxu0 0.0
      %676 = vmatpush1.msra.mxu0 0.0
      %677 = vmatprep.subr.mxu0 0.0
      %678 = vmatpush1.msra.mxu0 0.0
      %679 = vmatprep.subr.mxu0 0.0
      %680 = vmatpush1.msra.mxu0 0.0
      %681 = vmatprep.subr.mxu0 0.0
      %682 = vmatpush1.msra.mxu0 0.0
      %683 = vmatprep.subr.mxu0 0.0
      %684 = vmatpush1.msra.mxu0 0.0
      %685 = vmatprep.subr.mxu0 0.0
      %686 = vmatpush1.msra.mxu0 0.0
      %687 = vmatprep.subr.mxu0 0.0
      %688 = vmatpush1.msra.mxu0 0.0
      %689 = vmatprep.subr.mxu0 0.0
      %690 = vmatpush1.msra.mxu0 0.0
      %691 = vmatprep.subr.mxu0 0.0
      %692 = vmatpush1.msra.mxu0 0.0
      %693 = vmatprep.subr.mxu0 0.0
      %694 = vmatpush1.msra.mxu0 0.0
      %695 = vmatprep.subr.mxu0 0.0
      %696 = vmatpush1.msra.mxu0 0.0
      %697 = vmatprep.subr.mxu0 0.0
      %698 = vmatpush1.msra.mxu0 0.0
      %699 = vmatprep.subr.mxu0 0.0
      %700 = vmatpush1.msra.mxu0 0.0
      %701 = vmatprep.subr.mxu0 0.0
      %702 = vmatpush1.msra.mxu0 0.0
      %703 = vmatprep.subr.mxu0 0.0
      %704 = vmatpush1.msra.mxu0 0.0
      %705 = vmatprep.subr.mxu0 0.0
      %706 = vmatpush1.msra.mxu0 0.0
      %707 = vmatprep.subr.mxu0 0.0
      %708 = vmatpush1.msra.mxu0 0.0
      %709 = vmatprep.subr.mxu0 0.0
      %710 = vmatpush1.msra.mxu0 0.0
      %711 = vmatprep.subr.mxu0 0.0
      %712 = vmatpush1.msra.mxu0 0.0
      %713 = vmatprep.subr.mxu0 0.0
      %714 = vmatpush1.msra.mxu0 0.0
      %715 = vmatprep.mubr.f32.mxu0 0.0
      %716 = vmatmul.mubr.f32.gmra.mrb[0].mxu0 %v633
      %v717 = vpop.f32.mrb[0].mxu0
      %v718 = vadd.f32 0.0, %v717
      %v719 = vpop.f32.mrb[0].mxu0
      %720 = vmatprep.mubr.f32.mxu0 0.0
      %721 = vmatmul.mubr.f32.gmra.mrb[0].mxu0 %v635
      %v722 = vpop.f32.mrb[0].mxu0
      %v723 = vadd.f32 0.0, %v722
      %v724 = vpop.f32.mrb[0].mxu0
      %725 = vmatprep.mubr.f32.mxu0 0.0
      %726 = vmatmul.mubr.f32.gmra.mrb[0].mxu0 %v637
      %v727 = vpop.f32.mrb[0].mxu0
      %v728 = vadd.f32 0.0, %v727
      %v729 = vpop.f32.mrb[0].mxu0
      %730 = vmatprep.mubr.f32.mxu0 0.0
      %731 = vmatmul.mubr.f32.gmra.mrb[0].mxu0 %v639
      %v732 = vpop.f32.mrb[0].mxu0
      %v733 = vadd.f32 0.0, %v732
      %v734 = vpop.f32.mrb[0].mxu0
      %735 = vmatprep.mubr.f32.mxu0 0.0
      %736 = vmatmul.mubr.f32.gmra.mrb[0].mxu0 %v641
      %v737 = vpop.f32.mrb[0].mxu0
      %v738 = vadd.f32 0.0, %v737
      %v739 = vpop.f32.mrb[0].mxu0
      %740 = vmatprep.mubr.f32.mxu0 0.0
      %741 = vmatmul.mubr.f32.gmra.mrb[0].mxu0 %v643
      %v742 = vpop.f32.mrb[0].mxu0
      %v743 = vadd.f32 0.0, %v742
      %v744 = vpop.f32.mrb[0].mxu0
      %745 = vmatprep.mubr.f32.mxu0 0.0
      %746 = vmatmul.mubr.f32.gmra.mrb[0].mxu0 %v645
      %v747 = vpop.f32.mrb[0].mxu0
      %v748 = vadd.f32 0.0, %v747
      %v749 = vpop.f32.mrb[0].mxu0
      %750 = vmatprep.mubr.f32.mxu0 0.0
      %751 = vmatmul.mubr.f32.gmra.mrb[0].mxu0 %v647
      %v752 = vpop.f32.mrb[0].mxu0
      %v753 = vadd.f32 0.0, %v752
      %v754 = vpop.f32.mrb[0].mxu0
      %755 = vmatprep.mubr.f32.mxu0 0.0
      %756 = vmatmul.mubr.f32.gmra.mrb[0].mxu0 %v649
      %v757 = vpop.f32.mrb[0].mxu0
      %v758 = vadd.f32 0.0, %v757
      %v759 = vpop.f32.mrb[0].mxu0
      %760 = vdwg.mxu0
      %v761 = vadd.f32 %v563, %v718
      %v762 = vadd.f32 %v568, %v723
      %v763 = vadd.f32 %v573, %v728
      %v764 = vadd.f32 %v578, %v733
      %v765 = vadd.f32 %v583, %v738
      %v766 = vadd.f32 %v588, %v743
      %v767 = vadd.f32 %v593, %v748
      %v768 = vadd.f32 %v598, %v753
      %v769 = vadd.f32 %v603, %v758
      %v770 = vld [vmem:[%s4] sm:$0x1]
      %v771 = vld [vmem:[%s5] sm:$0x1]
      %v772 = vlaneseq
      %v773 = vshrl.u32 %v772, 7
      %v774 = vsub.s32 0, %v773
      %v775 = vrot.slane %v770, %v774
      %v776 = vmul.f32 %v761, %v775
      %v777 = vmul.f32 %v762, %v775
      %v778 = vmul.f32 %v763, %v775
      %v779 = vmul.f32 %v764, %v775
      %v780 = vmul.f32 %v765, %v775
      %v781 = vmul.f32 %v766, %v775
      %v782 = vmul.f32 %v767, %v775
      %v783 = vmul.f32 %v768, %v775
      %v784 = vmul.f32 %v769, %v775
      %v785 = vlaneseq
      %v786 = vshrl.u32 %v785, 7
      %v787 = vsub.s32 0, %v786
      %v788 = vrot.slane %v771, %v787
      %v789 = vadd.f32 %v776, %v788
      %v790 = vadd.f32 %v777, %v788
      %v791 = vadd.f32 %v778, %v788
      %v792 = vadd.f32 %v779, %v788
      %v793 = vadd.f32 %v780, %v788
      %v794 = vadd.f32 %v781, %v788
      %v795 = vadd.f32 %v782, %v788
      %v796 = vadd.f32 %v783, %v788
      %v797 = vadd.f32 %v784, %v788
      %v798 = vmax.f32 %v789, 0.0
      %v799 = vmax.f32 %v790, 0.0
      %v800 = vmax.f32 %v791, 0.0
      %v801 = vmax.f32 %v792, 0.0
      %v802 = vmax.f32 %v793, 0.0
      %v803 = vmax.f32 %v794, 0.0
      %v804 = vmax.f32 %v795, 0.0
      %v805 = vmax.f32 %v796, 0.0
      %v806 = vmax.f32 %v797, 0.0
      %807 = vst [vmem:[#allocation3 + $0x1] sm:$0xff] %v798
      %808 = vst [vmem:[#allocation3 + $0x9] sm:$0xff] %v799
      %809 = vst [vmem:[#allocation3 + $0x11] sm:$0xfc] %v800
      %810 = vst [vmem:[#allocation3 + $0x19] sm:$0xff] %v801
      %811 = vst [vmem:[#allocation3 + $0x21] sm:$0x3] %v802
      %812 = vst [vmem:[#allocation3 + $0x21] sm:$0xf0] %v802
      %813 = vst [vmem:[#allocation3 + $0x29] sm:$0xff] %v803
      %814 = vst [vmem:[#allocation3 + $0x31] sm:$0xf] %v804
      %815 = vst [vmem:[#allocation3 + $0x31] sm:$0xc0] %v804
      %816 = vst [vmem:[#allocation3 + $0x39] sm:$0xff] %v805
      %817 = vst [vmem:[#allocation3 + $0x41] sm:$0x3f] %v806
      %v818 = vld [vmem:[#allocation3] sm:$0xff]
      %v819 = vld [vmem:[#allocation3 + $0x8] sm:$0xff]
      %v820 = vld [vmem:[#allocation3 + $0x10] sm:$0xff]
      %v821 = vld [vmem:[#allocation3 + $0x18] sm:$0xff]
      %v822 = vld [vmem:[#allocation3 + $0x20] sm:$0xff]
      %v823 = vld [vmem:[#allocation3 + $0x28] sm:$0xff]
      %v824 = vld [vmem:[#allocation3 + $0x30] sm:$0xff]
      %v825 = vld [vmem:[#allocation3 + $0x38] sm:$0xff]
      %v826 = vld [vmem:[#allocation3 + $0x40] sm:$0xff]
      %v827 = vld [vmem:[%s2] sm:$0xff]
      %v828 = vld [vmem:[%s2 + $0x8] sm:$0xff]
      %v829 = vld [vmem:[%s2 + $0x10] sm:$0xff]
      %v830 = vld [vmem:[%s2 + $0x18] sm:$0xff]
      %v831 = vld [vmem:[%s2 + $0x20] sm:$0xff]
      %v832 = vld [vmem:[%s2 + $0x28] sm:$0xff]
      %v833 = vld [vmem:[%s2 + $0x30] sm:$0xff]
      %v834 = vld [vmem:[%s2 + $0x38] sm:$0xff]
      %v835 = vld [vmem:[%s2 + $0x40] sm:$0xff]
      %v836 = vld [vmem:[%s2 + $0x48] sm:$0xff]
      %v837 = vld [vmem:[%s2 + $0x50] sm:$0xff]
      %v838 = vld [vmem:[%s2 + $0x58] sm:$0xff]
      %v839 = vld [vmem:[%s2 + $0x60] sm:$0xff]
      %v840 = vld [vmem:[%s2 + $0x68] sm:$0xff]
      %v841 = vld [vmem:[%s2 + $0x70] sm:$0xff]
      %v842 = vld [vmem:[%s2 + $0x78] sm:$0xff]
      %s843 = scalar_lea.vmem %s2, 128
      %v844 = vld [vmem:[%s843] sm:$0xff]
      %v845 = vld [vmem:[%s843 + $0x8] sm:$0xff]
      %v846 = vld [vmem:[%s843 + $0x10] sm:$0xff]
      %v847 = vld [vmem:[%s843 + $0x18] sm:$0xff]
      %v848 = vld [vmem:[%s843 + $0x20] sm:$0xff]
      %v849 = vld [vmem:[%s843 + $0x28] sm:$0xff]
      %v850 = vld [vmem:[%s843 + $0x30] sm:$0xff]
      %v851 = vld [vmem:[%s843 + $0x38] sm:$0xff]
      %v852 = vld [vmem:[%s843 + $0x40] sm:$0xff]
      %v853 = vld [vmem:[%s843 + $0x48] sm:$0xff]
      %v854 = vld [vmem:[%s843 + $0x50] sm:$0xff]
      %v855 = vld [vmem:[%s843 + $0x58] sm:$0xff]
      %v856 = vld [vmem:[%s843 + $0x60] sm:$0xff]
      %v857 = vld [vmem:[%s843 + $0x68] sm:$0xff]
      %v858 = vld [vmem:[%s843 + $0x70] sm:$0xff]
      %v859 = vld [vmem:[%s843 + $0x78] sm:$0xff]
      %v869 = vrot.slane %v818, 1
      %v870 = vrot.slane %v819, 1
      %v871 = vsel %vm332, %v869, %v870
      %v872 = vrot.slane %v820, 1
      %v873 = vsel %vm332, %v870, %v872
      %v874 = vrot.slane %v821, 1
      %v875 = vsel %vm332, %v872, %v874
      %v876 = vrot.slane %v822, 1
      %v877 = vsel %vm332, %v874, %v876
      %v878 = vrot.slane %v823, 1
      %v879 = vsel %vm332, %v876, %v878
      %v880 = vrot.slane %v824, 1
      %v881 = vsel %vm332, %v878, %v880
      %v882 = vrot.slane %v825, 1
      %v883 = vsel %vm332, %v880, %v882
      %v884 = vrot.slane %v826, 1
      %v885 = vsel %vm332, %v882, %v884
      %895 = vmatprep.subr.mxu0 0.0
      %896 = vmatpush1.msra.mxu0 %v844
      %897 = vmatprep.subr.mxu0 0.0
      %898 = vmatpush1.msra.mxu0 %v845
      %899 = vmatprep.subr.mxu0 0.0
      %900 = vmatpush1.msra.mxu0 %v846
      %901 = vmatprep.subr.mxu0 0.0
      %902 = vmatpush1.msra.mxu0 %v847
      %903 = vmatprep.subr.mxu0 0.0
      %904 = vmatpush1.msra.mxu0 %v848
      %905 = vmatprep.subr.mxu0 0.0
      %906 = vmatpush1.msra.mxu0 %v849
      %907 = vmatprep.subr.mxu0 0.0
      %908 = vmatpush1.msra.mxu0 %v850
      %909 = vmatprep.subr.mxu0 0.0
      %910 = vmatpush1.msra.mxu0 %v851
      %911 = vmatprep.subr.mxu0 0.0
      %912 = vmatpush1.msra.mxu0 %v852
      %913 = vmatprep.subr.mxu0 0.0
      %914 = vmatpush1.msra.mxu0 %v853
      %915 = vmatprep.subr.mxu0 0.0
      %916 = vmatpush1.msra.mxu0 %v854
      %917 = vmatprep.subr.mxu0 0.0
      %918 = vmatpush1.msra.mxu0 %v855
      %919 = vmatprep.subr.mxu0 0.0
      %920 = vmatpush1.msra.mxu0 %v856
      %921 = vmatprep.subr.mxu0 0.0
      %922 = vmatpush1.msra.mxu0 %v857
      %923 = vmatprep.subr.mxu0 0.0
      %924 = vmatpush1.msra.mxu0 %v858
      %925 = vmatprep.subr.mxu0 0.0
      %926 = vmatpush1.msra.mxu0 %v859
      %927 = vmatprep.subr.mxu0 0.0
      %928 = vmatpush1.msra.mxu0 0.0
      %929 = vmatprep.subr.mxu0 0.0
      %930 = vmatpush1.msra.mxu0 0.0
      %931 = vmatprep.subr.mxu0 0.0
      %932 = vmatpush1.msra.mxu0 0.0
      %933 = vmatprep.subr.mxu0 0.0
      %934 = vmatpush1.msra.mxu0 0.0
      %935 = vmatprep.subr.mxu0 0.0
      %936 = vmatpush1.msra.mxu0 0.0
      %937 = vmatprep.subr.mxu0 0.0
      %938 = vmatpush1.msra.mxu0 0.0
      %939 = vmatprep.subr.mxu0 0.0
      %940 = vmatpush1.msra.mxu0 0.0
      %941 = vmatprep.subr.mxu0 0.0
      %942 = vmatpush1.msra.mxu0 0.0
      %943 = vmatprep.subr.mxu0 0.0
      %944 = vmatpush1.msra.mxu0 0.0
      %945 = vmatprep.subr.mxu0 0.0
      %946 = vmatpush1.msra.mxu0 0.0
      %947 = vmatprep.subr.mxu0 0.0
      %948 = vmatpush1.msra.mxu0 0.0
      %949 = vmatprep.subr.mxu0 0.0
      %950 = vmatpush1.msra.mxu0 0.0
      %951 = vmatprep.subr.mxu0 0.0
      %952 = vmatpush1.msra.mxu0 0.0
      %953 = vmatprep.subr.mxu0 0.0
      %954 = vmatpush1.msra.mxu0 0.0
      %955 = vmatprep.subr.mxu0 0.0
      %956 = vmatpush1.msra.mxu0 0.0
      %957 = vmatprep.subr.mxu0 0.0
      %958 = vmatpush1.msra.mxu0 0.0
      %959 = vmatprep.mubr.f32.mxu0 0.0
      %960 = vmatmul.mubr.f32.gmra.mrb[0].mxu0 %v871
      %v961 = vpop.f32.mrb[0].mxu0
      %v962 = vadd.f32 0.0, %v961
      %v963 = vpop.f32.mrb[0].mxu0
      %964 = vmatprep.mubr.f32.mxu0 0.0
      %965 = vmatmul.mubr.f32.gmra.mrb[0].mxu0 %v873
      %v966 = vpop.f32.mrb[0].mxu0
      %v967 = vadd.f32 0.0, %v966
      %v968 = vpop.f32.mrb[0].mxu0
      %969 = vmatprep.mubr.f32.mxu0 0.0
      %970 = vmatmul.mubr.f32.gmra.mrb[0].mxu0 %v875
      %v971 = vpop.f32.mrb[0].mxu0
      %v972 = vadd.f32 0.0, %v971
      %v973 = vpop.f32.mrb[0].mxu0
      %974 = vmatprep.mubr.f32.mxu0 0.0
      %975 = vmatmul.mubr.f32.gmra.mrb[0].mxu0 %v877
      %v976 = vpop.f32.mrb[0].mxu0
      %v977 = vadd.f32 0.0, %v976
      %v978 = vpop.f32.mrb[0].mxu0
      %979 = vmatprep.mubr.f32.mxu0 0.0
      %980 = vmatmul.mubr.f32.gmra.mrb[0].mxu0 %v879
      %v981 = vpop.f32.mrb[0].mxu0
      %v982 = vadd.f32 0.0, %v981
      %v983 = vpop.f32.mrb[0].mxu0
      %984 = vmatprep.mubr.f32.mxu0 0.0
      %985 = vmatmul.mubr.f32.gmra.mrb[0].mxu0 %v881
      %v986 = vpop.f32.mrb[0].mxu0
      %v987 = vadd.f32 0.0, %v986
      %v988 = vpop.f32.mrb[0].mxu0
      %989 = vmatprep.mubr.f32.mxu0 0.0
      %990 = vmatmul.mubr.f32.gmra.mrb[0].mxu0 %v883
      %v991 = vpop.f32.mrb[0].mxu0
      %v992 = vadd.f32 0.0, %v991
      %v993 = vpop.f32.mrb[0].mxu0
      %994 = vmatprep.mubr.f32.mxu0 0.0
      %995 = vmatmul.mubr.f32.gmra.mrb[0].mxu0 %v885
      %v996 = vpop.f32.mrb[0].mxu0
      %v997 = vadd.f32 0.0, %v996
      %v998 = vpop.f32.mrb[0].mxu0
      %999 = vmatprep.mubr.f32.mxu0 0.0
      %1000 = vmatmul.mubr.f32.gmra.mrb[0].mxu0 %v884
      %v1001 = vpop.f32.mrb[0].mxu0
      %v1002 = vadd.f32 0.0, %v1001
      %v1003 = vpop.f32.mrb[0].mxu0
      %1004 = vdwg.mxu0
      %1005 = vmatprep.subr.mxu0 0.0
      %1006 = vmatpush1.msra.mxu0 %v827
      %1007 = vmatprep.subr.mxu0 0.0
      %1008 = vmatpush1.msra.mxu0 %v828
      %1009 = vmatprep.subr.mxu0 0.0
      %1010 = vmatpush1.msra.mxu0 %v829
      %1011 = vmatprep.subr.mxu0 0.0
      %1012 = vmatpush1.msra.mxu0 %v830
      %1013 = vmatprep.subr.mxu0 0.0
      %1014 = vmatpush1.msra.mxu0 %v831
      %1015 = vmatprep.subr.mxu0 0.0
      %1016 = vmatpush1.msra.mxu0 %v832
      %1017 = vmatprep.subr.mxu0 0.0
      %1018 = vmatpush1.msra.mxu0 %v833
      %1019 = vmatprep.subr.mxu0 0.0
      %1020 = vmatpush1.msra.mxu0 %v834
      %1021 = vmatprep.subr.mxu0 0.0
      %1022 = vmatpush1.msra.mxu0 %v835
      %1023 = vmatprep.subr.mxu0 0.0
      %1024 = vmatpush1.msra.mxu0 %v836
      %1025 = vmatprep.subr.mxu0 0.0
      %1026 = vmatpush1.msra.mxu0 %v837
      %1027 = vmatprep.subr.mxu0 0.0
      %1028 = vmatpush1.msra.mxu0 %v838
      %1029 = vmatprep.subr.mxu0 0.0
      %1030 = vmatpush1.msra.mxu0 %v839
      %1031 = vmatprep.subr.mxu0 0.0
      %1032 = vmatpush1.msra.mxu0 %v840
      %1033 = vmatprep.subr.mxu0 0.0
      %1034 = vmatpush1.msra.mxu0 %v841
      %1035 = vmatprep.subr.mxu0 0.0
      %1036 = vmatpush1.msra.mxu0 %v842
      %1037 = vmatprep.subr.mxu0 0.0
      %1038 = vmatpush1.msra.mxu0 0.0
      %1039 = vmatprep.subr.mxu0 0.0
      %1040 = vmatpush1.msra.mxu0 0.0
      %1041 = vmatprep.subr.mxu0 0.0
      %1042 = vmatpush1.msra.mxu0 0.0
      %1043 = vmatprep.subr.mxu0 0.0
      %1044 = vmatpush1.msra.mxu0 0.0
      %1045 = vmatprep.subr.mxu0 0.0
      %1046 = vmatpush1.msra.mxu0 0.0
      %1047 = vmatprep.subr.mxu0 0.0
      %1048 = vmatpush1.msra.mxu0 0.0
      %1049 = vmatprep.subr.mxu0 0.0
      %1050 = vmatpush1.msra.mxu0 0.0
      %1051 = vmatprep.subr.mxu0 0.0
      %1052 = vmatpush1.msra.mxu0 0.0
      %1053 = vmatprep.subr.mxu0 0.0
      %1054 = vmatpush1.msra.mxu0 0.0
      %1055 = vmatprep.subr.mxu0 0.0
      %1056 = vmatpush1.msra.mxu0 0.0
      %1057 = vmatprep.subr.mxu0 0.0
      %1058 = vmatpush1.msra.mxu0 0.0
      %1059 = vmatprep.subr.mxu0 0.0
      %1060 = vmatpush1.msra.mxu0 0.0
      %1061 = vmatprep.subr.mxu0 0.0
      %1062 = vmatpush1.msra.mxu0 0.0
      %1063 = vmatprep.subr.mxu0 0.0
      %1064 = vmatpush1.msra.mxu0 0.0
      %1065 = vmatprep.subr.mxu0 0.0
      %1066 = vmatpush1.msra.mxu0 0.0
      %1067 = vmatprep.subr.mxu0 0.0
      %1068 = vmatpush1.msra.mxu0 0.0
      %1069 = vmatprep.mubr.f32.mxu0 0.0
      %1070 = vmatmul.mubr.f32.gmra.mrb[0].mxu0 %v818
      %v1071 = vpop.f32.mrb[0].mxu0
      %v1072 = vadd.f32 %v962, %v1071
      %v1073 = vpop.f32.mrb[0].mxu0
      %1074 = vmatprep.mubr.f32.mxu0 0.0
      %1075 = vmatmul.mubr.f32.gmra.mrb[0].mxu0 %v819
      %v1076 = vpop.f32.mrb[0].mxu0
      %v1077 = vadd.f32 %v967, %v1076
      %v1078 = vpop.f32.mrb[0].mxu0
      %1079 = vmatprep.mubr.f32.mxu0 0.0
      %1080 = vmatmul.mubr.f32.gmra.mrb[0].mxu0 %v820
      %v1081 = vpop.f32.mrb[0].mxu0
      %v1082 = vadd.f32 %v972, %v1081
      %v1083 = vpop.f32.mrb[0].mxu0
      %1084 = vmatprep.mubr.f32.mxu0 0.0
      %1085 = vmatmul.mubr.f32.gmra.mrb[0].mxu0 %v821
      %v1086 = vpop.f32.mrb[0].mxu0
      %v1087 = vadd.f32 %v977, %v1086
      %v1088 = vpop.f32.mrb[0].mxu0
      %1089 = vmatprep.mubr.f32.mxu0 0.0
      %1090 = vmatmul.mubr.f32.gmra.mrb[0].mxu0 %v822
      %v1091 = vpop.f32.mrb[0].mxu0
      %v1092 = vadd.f32 %v982, %v1091
      %v1093 = vpop.f32.mrb[0].mxu0
      %1094 = vmatprep.mubr.f32.mxu0 0.0
      %1095 = vmatmul.mubr.f32.gmra.mrb[0].mxu0 %v823
      %v1096 = vpop.f32.mrb[0].mxu0
      %v1097 = vadd.f32 %v987, %v1096
      %v1098 = vpop.f32.mrb[0].mxu0
      %1099 = vmatprep.mubr.f32.mxu0 0.0
      %1100 = vmatmul.mubr.f32.gmra.mrb[0].mxu0 %v824
      %v1101 = vpop.f32.mrb[0].mxu0
      %v1102 = vadd.f32 %v992, %v1101
      %v1103 = vpop.f32.mrb[0].mxu0
      %1104 = vmatprep.mubr.f32.mxu0 0.0
      %1105 = vmatmul.mubr.f32.gmra.mrb[0].mxu0 %v825
      %v1106 = vpop.f32.mrb[0].mxu0
      %v1107 = vadd.f32 %v997, %v1106
      %v1108 = vpop.f32.mrb[0].mxu0
      %1109 = vmatprep.mubr.f32.mxu0 0.0
      %1110 = vmatmul.mubr.f32.gmra.mrb[0].mxu0 %v826
      %v1111 = vpop.f32.mrb[0].mxu0
      %v1112 = vadd.f32 %v1002, %v1111
      %v1113 = vpop.f32.mrb[0].mxu0
      %1114 = vdwg.mxu0
      %s1115 = scalar_lea.vmem %s2, 256
      %v1116 = vld [vmem:[%s1115] sm:$0xff]
      %v1117 = vld [vmem:[%s1115 + $0x8] sm:$0xff]
      %v1118 = vld [vmem:[%s1115 + $0x10] sm:$0xff]
      %v1119 = vld [vmem:[%s1115 + $0x18] sm:$0xff]
      %v1120 = vld [vmem:[%s1115 + $0x20] sm:$0xff]
      %v1121 = vld [vmem:[%s1115 + $0x28] sm:$0xff]
      %v1122 = vld [vmem:[%s1115 + $0x30] sm:$0xff]
      %v1123 = vld [vmem:[%s1115 + $0x38] sm:$0xff]
      %v1124 = vld [vmem:[%s1115 + $0x40] sm:$0xff]
      %v1125 = vld [vmem:[%s1115 + $0x48] sm:$0xff]
      %v1126 = vld [vmem:[%s1115 + $0x50] sm:$0xff]
      %v1127 = vld [vmem:[%s1115 + $0x58] sm:$0xff]
      %v1128 = vld [vmem:[%s1115 + $0x60] sm:$0xff]
      %v1129 = vld [vmem:[%s1115 + $0x68] sm:$0xff]
      %v1130 = vld [vmem:[%s1115 + $0x70] sm:$0xff]
      %v1131 = vld [vmem:[%s1115 + $0x78] sm:$0xff]
      %v1132 = vrot.slane %v818, 2
      %v1133 = vrot.slane %v819, 2
      %v1134 = vsel %vm615, %v1132, %v1133
      %v1135 = vrot.slane %v820, 2
      %v1136 = vsel %vm615, %v1133, %v1135
      %v1137 = vrot.slane %v821, 2
      %v1138 = vsel %vm615, %v1135, %v1137
      %v1139 = vrot.slane %v822, 2
      %v1140 = vsel %vm615, %v1137, %v1139
      %v1141 = vrot.slane %v823, 2
      %v1142 = vsel %vm615, %v1139, %v1141
      %v1143 = vrot.slane %v824, 2
      %v1144 = vsel %vm615, %v1141, %v1143
      %v1145 = vrot.slane %v825, 2
      %v1146 = vsel %vm615, %v1143, %v1145
      %v1147 = vrot.slane %v826, 2
      %v1148 = vsel %vm615, %v1145, %v1147
      %1158 = vmatprep.subr.mxu0 0.0
      %1159 = vmatpush1.msra.mxu0 %v1116
      %1160 = vmatprep.subr.mxu0 0.0
      %1161 = vmatpush1.msra.mxu0 %v1117
      %1162 = vmatprep.subr.mxu0 0.0
      %1163 = vmatpush1.msra.mxu0 %v1118
      %1164 = vmatprep.subr.mxu0 0.0
      %1165 = vmatpush1.msra.mxu0 %v1119
      %1166 = vmatprep.subr.mxu0 0.0
      %1167 = vmatpush1.msra.mxu0 %v1120
      %1168 = vmatprep.subr.mxu0 0.0
      %1169 = vmatpush1.msra.mxu0 %v1121
      %1170 = vmatprep.subr.mxu0 0.0
      %1171 = vmatpush1.msra.mxu0 %v1122
      %1172 = vmatprep.subr.mxu0 0.0
      %1173 = vmatpush1.msra.mxu0 %v1123
      %1174 = vmatprep.subr.mxu0 0.0
      %1175 = vmatpush1.msra.mxu0 %v1124
      %1176 = vmatprep.subr.mxu0 0.0
      %1177 = vmatpush1.msra.mxu0 %v1125
      %1178 = vmatprep.subr.mxu0 0.0
      %1179 = vmatpush1.msra.mxu0 %v1126
      %1180 = vmatprep.subr.mxu0 0.0
      %1181 = vmatpush1.msra.mxu0 %v1127
      %1182 = vmatprep.subr.mxu0 0.0
      %1183 = vmatpush1.msra.mxu0 %v1128
      %1184 = vmatprep.subr.mxu0 0.0
      %1185 = vmatpush1.msra.mxu0 %v1129
      %1186 = vmatprep.subr.mxu0 0.0
      %1187 = vmatpush1.msra.mxu0 %v1130
      %1188 = vmatprep.subr.mxu0 0.0
      %1189 = vmatpush1.msra.mxu0 %v1131
      %1190 = vmatprep.subr.mxu0 0.0
      %1191 = vmatpush1.msra.mxu0 0.0
      %1192 = vmatprep.subr.mxu0 0.0
      %1193 = vmatpush1.msra.mxu0 0.0
      %1194 = vmatprep.subr.mxu0 0.0
      %1195 = vmatpush1.msra.mxu0 0.0
      %1196 = vmatprep.subr.mxu0 0.0
      %1197 = vmatpush1.msra.mxu0 0.0
      %1198 = vmatprep.subr.mxu0 0.0
      %1199 = vmatpush1.msra.mxu0 0.0
      %1200 = vmatprep.subr.mxu0 0.0
      %1201 = vmatpush1.msra.mxu0 0.0
      %1202 = vmatprep.subr.mxu0 0.0
      %1203 = vmatpush1.msra.mxu0 0.0
      %1204 = vmatprep.subr.mxu0 0.0
      %1205 = vmatpush1.msra.mxu0 0.0
      %1206 = vmatprep.subr.mxu0 0.0
      %1207 = vmatpush1.msra.mxu0 0.0
      %1208 = vmatprep.subr.mxu0 0.0
      %1209 = vmatpush1.msra.mxu0 0.0
      %1210 = vmatprep.subr.mxu0 0.0
      %1211 = vmatpush1.msra.mxu0 0.0
      %1212 = vmatprep.subr.mxu0 0.0
      %1213 = vmatpush1.msra.mxu0 0.0
      %1214 = vmatprep.subr.mxu0 0.0
      %1215 = vmatpush1.msra.mxu0 0.0
      %1216 = vmatprep.subr.mxu0 0.0
      %1217 = vmatpush1.msra.mxu0 0.0
      %1218 = vmatprep.subr.mxu0 0.0
      %1219 = vmatpush1.msra.mxu0 0.0
      %1220 = vmatprep.subr.mxu0 0.0
      %1221 = vmatpush1.msra.mxu0 0.0
      %1222 = vmatprep.mubr.f32.mxu0 0.0
      %1223 = vmatmul.mubr.f32.gmra.mrb[0].mxu0 %v1134
      %v1224 = vpop.f32.mrb[0].mxu0
      %v1225 = vadd.f32 0.0, %v1224
      %v1226 = vpop.f32.mrb[0].mxu0
      %1227 = vmatprep.mubr.f32.mxu0 0.0
      %1228 = vmatmul.mubr.f32.gmra.mrb[0].mxu0 %v1136
      %v1229 = vpop.f32.mrb[0].mxu0
      %v1230 = vadd.f32 0.0, %v1229
      %v1231 = vpop.f32.mrb[0].mxu0
      %1232 = vmatprep.mubr.f32.mxu0 0.0
      %1233 = vmatmul.mubr.f32.gmra.mrb[0].mxu0 %v1138
      %v1234 = vpop.f32.mrb[0].mxu0
      %v1235 = vadd.f32 0.0, %v1234
      %v1236 = vpop.f32.mrb[0].mxu0
      %1237 = vmatprep.mubr.f32.mxu0 0.0
      %1238 = vmatmul.mubr.f32.gmra.mrb[0].mxu0 %v1140
      %v1239 = vpop.f32.mrb[0].mxu0
      %v1240 = vadd.f32 0.0, %v1239
      %v1241 = vpop.f32.mrb[0].mxu0
      %1242 = vmatprep.mubr.f32.mxu0 0.0
      %1243 = vmatmul.mubr.f32.gmra.mrb[0].mxu0 %v1142
      %v1244 = vpop.f32.mrb[0].mxu0
      %v1245 = vadd.f32 0.0, %v1244
      %v1246 = vpop.f32.mrb[0].mxu0
      %1247 = vmatprep.mubr.f32.mxu0 0.0
      %1248 = vmatmul.mubr.f32.gmra.mrb[0].mxu0 %v1144
      %v1249 = vpop.f32.mrb[0].mxu0
      %v1250 = vadd.f32 0.0, %v1249
      %v1251 = vpop.f32.mrb[0].mxu0
      %1252 = vmatprep.mubr.f32.mxu0 0.0
      %1253 = vmatmul.mubr.f32.gmra.mrb[0].mxu0 %v1146
      %v1254 = vpop.f32.mrb[0].mxu0
      %v1255 = vadd.f32 0.0, %v1254
      %v1256 = vpop.f32.mrb[0].mxu0
      %1257 = vmatprep.mubr.f32.mxu0 0.0
      %1258 = vmatmul.mubr.f32.gmra.mrb[0].mxu0 %v1148
      %v1259 = vpop.f32.mrb[0].mxu0
      %v1260 = vadd.f32 0.0, %v1259
      %v1261 = vpop.f32.mrb[0].mxu0
      %1262 = vmatprep.mubr.f32.mxu0 0.0
      %1263 = vmatmul.mubr.f32.gmra.mrb[0].mxu0 %v1147
      %v1264 = vpop.f32.mrb[0].mxu0
      %v1265 = vadd.f32 0.0, %v1264
      %v1266 = vpop.f32.mrb[0].mxu0
      %1267 = vdwg.mxu0
      %v1268 = vadd.f32 %v1072, %v1225
      %v1269 = vadd.f32 %v1077, %v1230
      %v1270 = vadd.f32 %v1082, %v1235
      %v1271 = vadd.f32 %v1087, %v1240
      %v1272 = vadd.f32 %v1092, %v1245
      %v1273 = vadd.f32 %v1097, %v1250
      %v1274 = vadd.f32 %v1102, %v1255
      %v1275 = vadd.f32 %v1107, %v1260
      %v1276 = vadd.f32 %v1112, %v1265
      %v1277 = vld [vmem:[%s4 + $0x1] sm:$0x1]
      %v1278 = vld [vmem:[%s5 + $0x1] sm:$0x1]
      %v1279 = vlaneseq
      %v1280 = vshrl.u32 %v1279, 7
      %v1281 = vsub.s32 0, %v1280
      %v1282 = vrot.slane %v1277, %v1281
      %v1283 = vmul.f32 %v1268, %v1282
      %v1284 = vmul.f32 %v1269, %v1282
      %v1285 = vmul.f32 %v1270, %v1282
      %v1286 = vmul.f32 %v1271, %v1282
      %v1287 = vmul.f32 %v1272, %v1282
      %v1288 = vmul.f32 %v1273, %v1282
      %v1289 = vmul.f32 %v1274, %v1282
      %v1290 = vmul.f32 %v1275, %v1282
      %v1291 = vmul.f32 %v1276, %v1282
      %v1292 = vlaneseq
      %v1293 = vshrl.u32 %v1292, 7
      %v1294 = vsub.s32 0, %v1293
      %v1295 = vrot.slane %v1278, %v1294
      %v1296 = vadd.f32 %v1283, %v1295
      %v1297 = vadd.f32 %v1284, %v1295
      %v1298 = vadd.f32 %v1285, %v1295
      %v1299 = vadd.f32 %v1286, %v1295
      %v1300 = vadd.f32 %v1287, %v1295
      %v1301 = vadd.f32 %v1288, %v1295
      %v1302 = vadd.f32 %v1289, %v1295
      %v1303 = vadd.f32 %v1290, %v1295
      %v1304 = vadd.f32 %v1291, %v1295
      %v1305 = vmax.f32 %v1296, 0.0
      %v1306 = vmax.f32 %v1297, 0.0
      %v1307 = vmax.f32 %v1298, 0.0
      %v1308 = vmax.f32 %v1299, 0.0
      %v1309 = vmax.f32 %v1300, 0.0
      %v1310 = vmax.f32 %v1301, 0.0
      %v1311 = vmax.f32 %v1302, 0.0
      %v1312 = vmax.f32 %v1303, 0.0
      %v1313 = vmax.f32 %v1304, 0.0
      %1314 = vst [vmem:[#allocation3 + $0x1] sm:$0xff] %v1305
      %1315 = vst [vmem:[#allocation3 + $0x9] sm:$0xff] %v1306
      %1316 = vst [vmem:[#allocation3 + $0x11] sm:$0xfc] %v1307
      %1317 = vst [vmem:[#allocation3 + $0x19] sm:$0xff] %v1308
      %1318 = vst [vmem:[#allocation3 + $0x21] sm:$0x3] %v1309
      %1319 = vst [vmem:[#allocation3 + $0x21] sm:$0xf0] %v1309
      %1320 = vst [vmem:[#allocation3 + $0x29] sm:$0xff] %v1310
      %1321 = vst [vmem:[#allocation3 + $0x31] sm:$0xf] %v1311
      %1322 = vst [vmem:[#allocation3 + $0x31] sm:$0xc0] %v1311
      %1323 = vst [vmem:[#allocation3 + $0x39] sm:$0xff] %v1312
      %1324 = vst [vmem:[#allocation3 + $0x41] sm:$0x3f] %v1313
      %v1325 = vld [vmem:[#allocation3] sm:$0xff]
      %v1326 = vld [vmem:[#allocation3 + $0x8] sm:$0xff]
      %v1327 = vld [vmem:[#allocation3 + $0x10] sm:$0xff]
      %v1328 = vld [vmem:[#allocation3 + $0x18] sm:$0xff]
      %v1329 = vld [vmem:[#allocation3 + $0x20] sm:$0xff]
      %v1330 = vld [vmem:[#allocation3 + $0x28] sm:$0xff]
      %v1331 = vld [vmem:[#allocation3 + $0x30] sm:$0xff]
      %v1332 = vld [vmem:[#allocation3 + $0x38] sm:$0xff]
      %v1333 = vld [vmem:[#allocation3 + $0x40] sm:$0xff]
      %v1334 = vld [vmem:[%s3] sm:$0xff]
      %v1335 = vld [vmem:[%s3 + $0x8] sm:$0xff]
      %v1336 = vld [vmem:[%s3 + $0x10] sm:$0xff]
      %v1337 = vld [vmem:[%s3 + $0x18] sm:$0xff]
      %v1338 = vld [vmem:[%s3 + $0x20] sm:$0xff]
      %v1339 = vld [vmem:[%s3 + $0x28] sm:$0xff]
      %v1340 = vld [vmem:[%s3 + $0x30] sm:$0xff]
      %v1341 = vld [vmem:[%s3 + $0x38] sm:$0xff]
      %v1342 = vld [vmem:[%s3 + $0x40] sm:$0xff]
      %v1343 = vld [vmem:[%s3 + $0x48] sm:$0xff]
      %v1344 = vld [vmem:[%s3 + $0x50] sm:$0xff]
      %v1345 = vld [vmem:[%s3 + $0x58] sm:$0xff]
      %v1346 = vld [vmem:[%s3 + $0x60] sm:$0xff]
      %v1347 = vld [vmem:[%s3 + $0x68] sm:$0xff]
      %v1348 = vld [vmem:[%s3 + $0x70] sm:$0xff]
      %v1349 = vld [vmem:[%s3 + $0x78] sm:$0xff]
      %s1350 = scalar_lea.vmem %s3, 128
      %v1351 = vld [vmem:[%s1350] sm:$0xff]
      %v1352 = vld [vmem:[%s1350 + $0x8] sm:$0xff]
      %v1353 = vld [vmem:[%s1350 + $0x10] sm:$0xff]
      %v1354 = vld [vmem:[%s1350 + $0x18] sm:$0xff]
      %v1355 = vld [vmem:[%s1350 + $0x20] sm:$0xff]
      %v1356 = vld [vmem:[%s1350 + $0x28] sm:$0xff]
      %v1357 = vld [vmem:[%s1350 + $0x30] sm:$0xff]
      %v1358 = vld [vmem:[%s1350 + $0x38] sm:$0xff]
      %v1359 = vld [vmem:[%s1350 + $0x40] sm:$0xff]
      %v1360 = vld [vmem:[%s1350 + $0x48] sm:$0xff]
      %v1361 = vld [vmem:[%s1350 + $0x50] sm:$0xff]
      %v1362 = vld [vmem:[%s1350 + $0x58] sm:$0xff]
      %v1363 = vld [vmem:[%s1350 + $0x60] sm:$0xff]
      %v1364 = vld [vmem:[%s1350 + $0x68] sm:$0xff]
      %v1365 = vld [vmem:[%s1350 + $0x70] sm:$0xff]
      %v1366 = vld [vmem:[%s1350 + $0x78] sm:$0xff]
      %v1376 = vrot.slane %v1325, 1
      %v1377 = vrot.slane %v1326, 1
      %v1378 = vsel %vm332, %v1376, %v1377
      %v1379 = vrot.slane %v1327, 1
      %v1380 = vsel %vm332, %v1377, %v1379
      %v1381 = vrot.slane %v1328, 1
      %v1382 = vsel %vm332, %v1379, %v1381
      %v1383 = vrot.slane %v1329, 1
      %v1384 = vsel %vm332, %v1381, %v1383
      %v1385 = vrot.slane %v1330, 1
      %v1386 = vsel %vm332, %v1383, %v1385
      %v1387 = vrot.slane %v1331, 1
      %v1388 = vsel %vm332, %v1385, %v1387
      %v1389 = vrot.slane %v1332, 1
      %v1390 = vsel %vm332, %v1387, %v1389
      %v1391 = vrot.slane %v1333, 1
      %v1392 = vsel %vm332, %v1389, %v1391
      %1402 = vmatprep.subr.mxu0 0.0
      %1403 = vmatpush1.msra.mxu0 %v1351
      %1404 = vmatprep.subr.mxu0 0.0
      %1405 = vmatpush1.msra.mxu0 %v1352
      %1406 = vmatprep.subr.mxu0 0.0
      %1407 = vmatpush1.msra.mxu0 %v1353
      %1408 = vmatprep.subr.mxu0 0.0
      %1409 = vmatpush1.msra.mxu0 %v1354
      %1410 = vmatprep.subr.mxu0 0.0
      %1411 = vmatpush1.msra.mxu0 %v1355
      %1412 = vmatprep.subr.mxu0 0.0
      %1413 = vmatpush1.msra.mxu0 %v1356
      %1414 = vmatprep.subr.mxu0 0.0
      %1415 = vmatpush1.msra.mxu0 %v1357
      %1416 = vmatprep.subr.mxu0 0.0
      %1417 = vmatpush1.msra.mxu0 %v1358
      %1418 = vmatprep.subr.mxu0 0.0
      %1419 = vmatpush1.msra.mxu0 %v1359
      %1420 = vmatprep.subr.mxu0 0.0
      %1421 = vmatpush1.msra.mxu0 %v1360
      %1422 = vmatprep.subr.mxu0 0.0
      %1423 = vmatpush1.msra.mxu0 %v1361
      %1424 = vmatprep.subr.mxu0 0.0
      %1425 = vmatpush1.msra.mxu0 %v1362
      %1426 = vmatprep.subr.mxu0 0.0
      %1427 = vmatpush1.msra.mxu0 %v1363
      %1428 = vmatprep.subr.mxu0 0.0
      %1429 = vmatpush1.msra.mxu0 %v1364
      %1430 = vmatprep.subr.mxu0 0.0
      %1431 = vmatpush1.msra.mxu0 %v1365
      %1432 = vmatprep.subr.mxu0 0.0
      %1433 = vmatpush1.msra.mxu0 %v1366
      %1434 = vmatprep.subr.mxu0 0.0
      %1435 = vmatpush1.msra.mxu0 0.0
      %1436 = vmatprep.subr.mxu0 0.0
      %1437 = vmatpush1.msra.mxu0 0.0
      %1438 = vmatprep.subr.mxu0 0.0
      %1439 = vmatpush1.msra.mxu0 0.0
      %1440 = vmatprep.subr.mxu0 0.0
      %1441 = vmatpush1.msra.mxu0 0.0
      %1442 = vmatprep.subr.mxu0 0.0
      %1443 = vmatpush1.msra.mxu0 0.0
      %1444 = vmatprep.subr.mxu0 0.0
      %1445 = vmatpush1.msra.mxu0 0.0
      %1446 = vmatprep.subr.mxu0 0.0
      %1447 = vmatpush1.msra.mxu0 0.0
      %1448 = vmatprep.subr.mxu0 0.0
      %1449 = vmatpush1.msra.mxu0 0.0
      %1450 = vmatprep.subr.mxu0 0.0
      %1451 = vmatpush1.msra.mxu0 0.0
      %1452 = vmatprep.subr.mxu0 0.0
      %1453 = vmatpush1.msra.mxu0 0.0
      %1454 = vmatprep.subr.mxu0 0.0
      %1455 = vmatpush1.msra.mxu0 0.0
      %1456 = vmatprep.subr.mxu0 0.0
      %1457 = vmatpush1.msra.mxu0 0.0
      %1458 = vmatprep.subr.mxu0 0.0
      %1459 = vmatpush1.msra.mxu0 0.0
      %1460 = vmatprep.subr.mxu0 0.0
      %1461 = vmatpush1.msra.mxu0 0.0
      %1462 = vmatprep.subr.mxu0 0.0
      %1463 = vmatpush1.msra.mxu0 0.0
      %1464 = vmatprep.subr.mxu0 0.0
      %1465 = vmatpush1.msra.mxu0 0.0
      %1466 = vmatprep.mubr.f32.mxu0 0.0
      %1467 = vmatmul.mubr.f32.gmra.mrb[0].mxu0 %v1378
      %v1468 = vpop.f32.mrb[0].mxu0
      %v1469 = vadd.f32 0.0, %v1468
      %v1470 = vpop.f32.mrb[0].mxu0
      %1471 = vmatprep.mubr.f32.mxu0 0.0
      %1472 = vmatmul.mubr.f32.gmra.mrb[0].mxu0 %v1380
      %v1473 = vpop.f32.mrb[0].mxu0
      %v1474 = vadd.f32 0.0, %v1473
      %v1475 = vpop.f32.mrb[0].mxu0
      %1476 = vmatprep.mubr.f32.mxu0 0.0
      %1477 = vmatmul.mubr.f32.gmra.mrb[0].mxu0 %v1382
      %v1478 = vpop.f32.mrb[0].mxu0
      %v1479 = vadd.f32 0.0, %v1478
      %v1480 = vpop.f32.mrb[0].mxu0
      %1481 = vmatprep.mubr.f32.mxu0 0.0
      %1482 = vmatmul.mubr.f32.gmra.mrb[0].mxu0 %v1384
      %v1483 = vpop.f32.mrb[0].mxu0
      %v1484 = vadd.f32 0.0, %v1483
      %v1485 = vpop.f32.mrb[0].mxu0
      %1486 = vmatprep.mubr.f32.mxu0 0.0
      %1487 = vmatmul.mubr.f32.gmra.mrb[0].mxu0 %v1386
      %v1488 = vpop.f32.mrb[0].mxu0
      %v1489 = vadd.f32 0.0, %v1488
      %v1490 = vpop.f32.mrb[0].mxu0
      %1491 = vmatprep.mubr.f32.mxu0 0.0
      %1492 = vmatmul.mubr.f32.gmra.mrb[0].mxu0 %v1388
      %v1493 = vpop.f32.mrb[0].mxu0
      %v1494 = vadd.f32 0.0, %v1493
      %v1495 = vpop.f32.mrb[0].mxu0
      %1496 = vmatprep.mubr.f32.mxu0 0.0
      %1497 = vmatmul.mubr.f32.gmra.mrb[0].mxu0 %v1390
      %v1498 = vpop.f32.mrb[0].mxu0
      %v1499 = vadd.f32 0.0, %v1498
      %v1500 = vpop.f32.mrb[0].mxu0
      %1501 = vmatprep.mubr.f32.mxu0 0.0
      %1502 = vmatmul.mubr.f32.gmra.mrb[0].mxu0 %v1392
      %v1503 = vpop.f32.mrb[0].mxu0
      %v1504 = vadd.f32 0.0, %v1503
      %v1505 = vpop.f32.mrb[0].mxu0
      %1506 = vmatprep.mubr.f32.mxu0 0.0
      %1507 = vmatmul.mubr.f32.gmra.mrb[0].mxu0 %v1391
      %v1508 = vpop.f32.mrb[0].mxu0
      %v1509 = vadd.f32 0.0, %v1508
      %v1510 = vpop.f32.mrb[0].mxu0
      %1511 = vdwg.mxu0
      %1512 = vmatprep.subr.mxu0 0.0
      %1513 = vmatpush1.msra.mxu0 %v1334
      %1514 = vmatprep.subr.mxu0 0.0
      %1515 = vmatpush1.msra.mxu0 %v1335
      %1516 = vmatprep.subr.mxu0 0.0
      %1517 = vmatpush1.msra.mxu0 %v1336
      %1518 = vmatprep.subr.mxu0 0.0
      %1519 = vmatpush1.msra.mxu0 %v1337
      %1520 = vmatprep.subr.mxu0 0.0
      %1521 = vmatpush1.msra.mxu0 %v1338
      %1522 = vmatprep.subr.mxu0 0.0
      %1523 = vmatpush1.msra.mxu0 %v1339
      %1524 = vmatprep.subr.mxu0 0.0
      %1525 = vmatpush1.msra.mxu0 %v1340
      %1526 = vmatprep.subr.mxu0 0.0
      %1527 = vmatpush1.msra.mxu0 %v1341
      %1528 = vmatprep.subr.mxu0 0.0
      %1529 = vmatpush1.msra.mxu0 %v1342
      %1530 = vmatprep.subr.mxu0 0.0
      %1531 = vmatpush1.msra.mxu0 %v1343
      %1532 = vmatprep.subr.mxu0 0.0
      %1533 = vmatpush1.msra.mxu0 %v1344
      %1534 = vmatprep.subr.mxu0 0.0
      %1535 = vmatpush1.msra.mxu0 %v1345
      %1536 = vmatprep.subr.mxu0 0.0
      %1537 = vmatpush1.msra.mxu0 %v1346
      %1538 = vmatprep.subr.mxu0 0.0
      %1539 = vmatpush1.msra.mxu0 %v1347
      %1540 = vmatprep.subr.mxu0 0.0
      %1541 = vmatpush1.msra.mxu0 %v1348
      %1542 = vmatprep.subr.mxu0 0.0
      %1543 = vmatpush1.msra.mxu0 %v1349
      %1544 = vmatprep.subr.mxu0 0.0
      %1545 = vmatpush1.msra.mxu0 0.0
      %1546 = vmatprep.subr.mxu0 0.0
      %1547 = vmatpush1.msra.mxu0 0.0
      %1548 = vmatprep.subr.mxu0 0.0
      %1549 = vmatpush1.msra.mxu0 0.0
      %1550 = vmatprep.subr.mxu0 0.0
      %1551 = vmatpush1.msra.mxu0 0.0
      %1552 = vmatprep.subr.mxu0 0.0
      %1553 = vmatpush1.msra.mxu0 0.0
      %1554 = vmatprep.subr.mxu0 0.0
      %1555 = vmatpush1.msra.mxu0 0.0
      %1556 = vmatprep.subr.mxu0 0.0
      %1557 = vmatpush1.msra.mxu0 0.0
      %1558 = vmatprep.subr.mxu0 0.0
      %1559 = vmatpush1.msra.mxu0 0.0
      %1560 = vmatprep.subr.mxu0 0.0
      %1561 = vmatpush1.msra.mxu0 0.0
      %1562 = vmatprep.subr.mxu0 0.0
      %1563 = vmatpush1.msra.mxu0 0.0
      %1564 = vmatprep.subr.mxu0 0.0
      %1565 = vmatpush1.msra.mxu0 0.0
      %1566 = vmatprep.subr.mxu0 0.0
      %1567 = vmatpush1.msra.mxu0 0.0
      %1568 = vmatprep.subr.mxu0 0.0
      %1569 = vmatpush1.msra.mxu0 0.0
      %1570 = vmatprep.subr.mxu0 0.0
      %1571 = vmatpush1.msra.mxu0 0.0
      %1572 = vmatprep.subr.mxu0 0.0
      %1573 = vmatpush1.msra.mxu0 0.0
      %1574 = vmatprep.subr.mxu0 0.0
      %1575 = vmatpush1.msra.mxu0 0.0
      %1576 = vmatprep.mubr.f32.mxu0 0.0
      %1577 = vmatmul.mubr.f32.gmra.mrb[0].mxu0 %v1325
      %v1578 = vpop.f32.mrb[0].mxu0
      %v1579 = vadd.f32 %v1469, %v1578
      %v1580 = vpop.f32.mrb[0].mxu0
      %1581 = vmatprep.mubr.f32.mxu0 0.0
      %1582 = vmatmul.mubr.f32.gmra.mrb[0].mxu0 %v1326
      %v1583 = vpop.f32.mrb[0].mxu0
      %v1584 = vadd.f32 %v1474, %v1583
      %v1585 = vpop.f32.mrb[0].mxu0
      %1586 = vmatprep.mubr.f32.mxu0 0.0
      %1587 = vmatmul.mubr.f32.gmra.mrb[0].mxu0 %v1327
      %v1588 = vpop.f32.mrb[0].mxu0
      %v1589 = vadd.f32 %v1479, %v1588
      %v1590 = vpop.f32.mrb[0].mxu0
      %1591 = vmatprep.mubr.f32.mxu0 0.0
      %1592 = vmatmul.mubr.f32.gmra.mrb[0].mxu0 %v1328
      %v1593 = vpop.f32.mrb[0].mxu0
      %v1594 = vadd.f32 %v1484, %v1593
      %v1595 = vpop.f32.mrb[0].mxu0
      %1596 = vmatprep.mubr.f32.mxu0 0.0
      %1597 = vmatmul.mubr.f32.gmra.mrb[0].mxu0 %v1329
      %v1598 = vpop.f32.mrb[0].mxu0
      %v1599 = vadd.f32 %v1489, %v1598
      %v1600 = vpop.f32.mrb[0].mxu0
      %1601 = vmatprep.mubr.f32.mxu0 0.0
      %1602 = vmatmul.mubr.f32.gmra.mrb[0].mxu0 %v1330
      %v1603 = vpop.f32.mrb[0].mxu0
      %v1604 = vadd.f32 %v1494, %v1603
      %v1605 = vpop.f32.mrb[0].mxu0
      %1606 = vmatprep.mubr.f32.mxu0 0.0
      %1607 = vmatmul.mubr.f32.gmra.mrb[0].mxu0 %v1331
      %v1608 = vpop.f32.mrb[0].mxu0
      %v1609 = vadd.f32 %v1499, %v1608
      %v1610 = vpop.f32.mrb[0].mxu0
      %1611 = vmatprep.mubr.f32.mxu0 0.0
      %1612 = vmatmul.mubr.f32.gmra.mrb[0].mxu0 %v1332
      %v1613 = vpop.f32.mrb[0].mxu0
      %v1614 = vadd.f32 %v1504, %v1613
      %v1615 = vpop.f32.mrb[0].mxu0
      %1616 = vmatprep.mubr.f32.mxu0 0.0
      %1617 = vmatmul.mubr.f32.gmra.mrb[0].mxu0 %v1333
      %v1618 = vpop.f32.mrb[0].mxu0
      %v1619 = vadd.f32 %v1509, %v1618
      %v1620 = vpop.f32.mrb[0].mxu0
      %1621 = vdwg.mxu0
      %s1622 = scalar_lea.vmem %s3, 256
      %v1623 = vld [vmem:[%s1622] sm:$0xff]
      %v1624 = vld [vmem:[%s1622 + $0x8] sm:$0xff]
      %v1625 = vld [vmem:[%s1622 + $0x10] sm:$0xff]
      %v1626 = vld [vmem:[%s1622 + $0x18] sm:$0xff]
      %v1627 = vld [vmem:[%s1622 + $0x20] sm:$0xff]
      %v1628 = vld [vmem:[%s1622 + $0x28] sm:$0xff]
      %v1629 = vld [vmem:[%s1622 + $0x30] sm:$0xff]
      %v1630 = vld [vmem:[%s1622 + $0x38] sm:$0xff]
      %v1631 = vld [vmem:[%s1622 + $0x40] sm:$0xff]
      %v1632 = vld [vmem:[%s1622 + $0x48] sm:$0xff]
      %v1633 = vld [vmem:[%s1622 + $0x50] sm:$0xff]
      %v1634 = vld [vmem:[%s1622 + $0x58] sm:$0xff]
      %v1635 = vld [vmem:[%s1622 + $0x60] sm:$0xff]
      %v1636 = vld [vmem:[%s1622 + $0x68] sm:$0xff]
      %v1637 = vld [vmem:[%s1622 + $0x70] sm:$0xff]
      %v1638 = vld [vmem:[%s1622 + $0x78] sm:$0xff]
      %v1639 = vrot.slane %v1325, 2
      %v1640 = vrot.slane %v1326, 2
      %v1641 = vsel %vm615, %v1639, %v1640
      %v1642 = vrot.slane %v1327, 2
      %v1643 = vsel %vm615, %v1640, %v1642
      %v1644 = vrot.slane %v1328, 2
      %v1645 = vsel %vm615, %v1642, %v1644
      %v1646 = vrot.slane %v1329, 2
      %v1647 = vsel %vm615, %v1644, %v1646
      %v1648 = vrot.slane %v1330, 2
      %v1649 = vsel %vm615, %v1646, %v1648
      %v1650 = vrot.slane %v1331, 2
      %v1651 = vsel %vm615, %v1648, %v1650
      %v1652 = vrot.slane %v1332, 2
      %v1653 = vsel %vm615, %v1650, %v1652
      %v1654 = vrot.slane %v1333, 2
      %v1655 = vsel %vm615, %v1652, %v1654
      %1665 = vmatprep.subr.mxu0 0.0
      %1666 = vmatpush1.msra.mxu0 %v1623
      %1667 = vmatprep.subr.mxu0 0.0
      %1668 = vmatpush1.msra.mxu0 %v1624
      %1669 = vmatprep.subr.mxu0 0.0
      %1670 = vmatpush1.msra.mxu0 %v1625
      %1671 = vmatprep.subr.mxu0 0.0
      %1672 = vmatpush1.msra.mxu0 %v1626
      %1673 = vmatprep.subr.mxu0 0.0
      %1674 = vmatpush1.msra.mxu0 %v1627
      %1675 = vmatprep.subr.mxu0 0.0
      %1676 = vmatpush1.msra.mxu0 %v1628
      %1677 = vmatprep.subr.mxu0 0.0
      %1678 = vmatpush1.msra.mxu0 %v1629
      %1679 = vmatprep.subr.mxu0 0.0
      %1680 = vmatpush1.msra.mxu0 %v1630
      %1681 = vmatprep.subr.mxu0 0.0
      %1682 = vmatpush1.msra.mxu0 %v1631
      %1683 = vmatprep.subr.mxu0 0.0
      %1684 = vmatpush1.msra.mxu0 %v1632
      %1685 = vmatprep.subr.mxu0 0.0
      %1686 = vmatpush1.msra.mxu0 %v1633
      %1687 = vmatprep.subr.mxu0 0.0
      %1688 = vmatpush1.msra.mxu0 %v1634
      %1689 = vmatprep.subr.mxu0 0.0
      %1690 = vmatpush1.msra.mxu0 %v1635
      %1691 = vmatprep.subr.mxu0 0.0
      %1692 = vmatpush1.msra.mxu0 %v1636
      %1693 = vmatprep.subr.mxu0 0.0
      %1694 = vmatpush1.msra.mxu0 %v1637
      %1695 = vmatprep.subr.mxu0 0.0
      %1696 = vmatpush1.msra.mxu0 %v1638
      %1697 = vmatprep.subr.mxu0 0.0
      %1698 = vmatpush1.msra.mxu0 0.0
      %1699 = vmatprep.subr.mxu0 0.0
      %1700 = vmatpush1.msra.mxu0 0.0
      %1701 = vmatprep.subr.mxu0 0.0
      %1702 = vmatpush1.msra.mxu0 0.0
      %1703 = vmatprep.subr.mxu0 0.0
      %1704 = vmatpush1.msra.mxu0 0.0
      %1705 = vmatprep.subr.mxu0 0.0
      %1706 = vmatpush1.msra.mxu0 0.0
      %1707 = vmatprep.subr.mxu0 0.0
      %1708 = vmatpush1.msra.mxu0 0.0
      %1709 = vmatprep.subr.mxu0 0.0
      %1710 = vmatpush1.msra.mxu0 0.0
      %1711 = vmatprep.subr.mxu0 0.0
      %1712 = vmatpush1.msra.mxu0 0.0
      %1713 = vmatprep.subr.mxu0 0.0
      %1714 = vmatpush1.msra.mxu0 0.0
      %1715 = vmatprep.subr.mxu0 0.0
      %1716 = vmatpush1.msra.mxu0 0.0
      %1717 = vmatprep.subr.mxu0 0.0
      %1718 = vmatpush1.msra.mxu0 0.0
      %1719 = vmatprep.subr.mxu0 0.0
      %1720 = vmatpush1.msra.mxu0 0.0
      %1721 = vmatprep.subr.mxu0 0.0
      %1722 = vmatpush1.msra.mxu0 0.0
      %1723 = vmatprep.subr.mxu0 0.0
      %1724 = vmatpush1.msra.mxu0 0.0
      %1725 = vmatprep.subr.mxu0 0.0
      %1726 = vmatpush1.msra.mxu0 0.0
      %1727 = vmatprep.subr.mxu0 0.0
      %1728 = vmatpush1.msra.mxu0 0.0
      %1729 = vmatprep.mubr.f32.mxu0 0.0
      %1730 = vmatmul.mubr.f32.gmra.mrb[0].mxu0 %v1641
      %v1731 = vpop.f32.mrb[0].mxu0
      %v1732 = vadd.f32 0.0, %v1731
      %v1733 = vpop.f32.mrb[0].mxu0
      %1734 = vmatprep.mubr.f32.mxu0 0.0
      %1735 = vmatmul.mubr.f32.gmra.mrb[0].mxu0 %v1643
      %v1736 = vpop.f32.mrb[0].mxu0
      %v1737 = vadd.f32 0.0, %v1736
      %v1738 = vpop.f32.mrb[0].mxu0
      %1739 = vmatprep.mubr.f32.mxu0 0.0
      %1740 = vmatmul.mubr.f32.gmra.mrb[0].mxu0 %v1645
      %v1741 = vpop.f32.mrb[0].mxu0
      %v1742 = vadd.f32 0.0, %v1741
      %v1743 = vpop.f32.mrb[0].mxu0
      %1744 = vmatprep.mubr.f32.mxu0 0.0
      %1745 = vmatmul.mubr.f32.gmra.mrb[0].mxu0 %v1647
      %v1746 = vpop.f32.mrb[0].mxu0
      %v1747 = vadd.f32 0.0, %v1746
      %v1748 = vpop.f32.mrb[0].mxu0
      %1749 = vmatprep.mubr.f32.mxu0 0.0
      %1750 = vmatmul.mubr.f32.gmra.mrb[0].mxu0 %v1649
      %v1751 = vpop.f32.mrb[0].mxu0
      %v1752 = vadd.f32 0.0, %v1751
      %v1753 = vpop.f32.mrb[0].mxu0
      %1754 = vmatprep.mubr.f32.mxu0 0.0
      %1755 = vmatmul.mubr.f32.gmra.mrb[0].mxu0 %v1651
      %v1756 = vpop.f32.mrb[0].mxu0
      %v1757 = vadd.f32 0.0, %v1756
      %v1758 = vpop.f32.mrb[0].mxu0
      %1759 = vmatprep.mubr.f32.mxu0 0.0
      %1760 = vmatmul.mubr.f32.gmra.mrb[0].mxu0 %v1653
      %v1761 = vpop.f32.mrb[0].mxu0
      %v1762 = vadd.f32 0.0, %v1761
      %v1763 = vpop.f32.mrb[0].mxu0
      %1764 = vmatprep.mubr.f32.mxu0 0.0
      %1765 = vmatmul.mubr.f32.gmra.mrb[0].mxu0 %v1655
      %v1766 = vpop.f32.mrb[0].mxu0
      %v1767 = vadd.f32 0.0, %v1766
      %v1768 = vpop.f32.mrb[0].mxu0
      %1769 = vmatprep.mubr.f32.mxu0 0.0
      %1770 = vmatmul.mubr.f32.gmra.mrb[0].mxu0 %v1654
      %v1771 = vpop.f32.mrb[0].mxu0
      %v1772 = vadd.f32 0.0, %v1771
      %v1773 = vpop.f32.mrb[0].mxu0
      %1774 = vdwg.mxu0
      %v1775 = vadd.f32 %v1579, %v1732
      %v1776 = vadd.f32 %v1584, %v1737
      %v1777 = vadd.f32 %v1589, %v1742
      %v1778 = vadd.f32 %v1594, %v1747
      %v1779 = vadd.f32 %v1599, %v1752
      %v1780 = vadd.f32 %v1604, %v1757
      %v1781 = vadd.f32 %v1609, %v1762
      %v1782 = vadd.f32 %v1614, %v1767
      %v1783 = vadd.f32 %v1619, %v1772
      %v1784 = vld [vmem:[%s4 + $0x2] sm:$0x1]
      %v1785 = vld [vmem:[%s5 + $0x2] sm:$0x1]
      %v1786 = vlaneseq
      %v1787 = vshrl.u32 %v1786, 7
      %v1788 = vsub.s32 0, %v1787
      %v1789 = vrot.slane %v1784, %v1788
      %v1790 = vmul.f32 %v1775, %v1789
      %v1791 = vmul.f32 %v1776, %v1789
      %v1792 = vmul.f32 %v1777, %v1789
      %v1793 = vmul.f32 %v1778, %v1789
      %v1794 = vmul.f32 %v1779, %v1789
      %v1795 = vmul.f32 %v1780, %v1789
      %v1796 = vmul.f32 %v1781, %v1789
      %v1797 = vmul.f32 %v1782, %v1789
      %v1798 = vmul.f32 %v1783, %v1789
      %v1799 = vlaneseq
      %v1800 = vshrl.u32 %v1799, 7
      %v1801 = vsub.s32 0, %v1800
      %v1802 = vrot.slane %v1785, %v1801
      %v1803 = vadd.f32 %v1790, %v1802
      %v1804 = vadd.f32 %v1791, %v1802
      %v1805 = vadd.f32 %v1792, %v1802
      %v1806 = vadd.f32 %v1793, %v1802
      %v1807 = vadd.f32 %v1794, %v1802
      %v1808 = vadd.f32 %v1795, %v1802
      %v1809 = vadd.f32 %v1796, %v1802
      %v1810 = vadd.f32 %v1797, %v1802
      %v1811 = vadd.f32 %v1798, %v1802
      %v1812 = vmax.f32 %v1803, 0.0
      %v1813 = vmax.f32 %v1804, 0.0
      %v1814 = vmax.f32 %v1805, 0.0
      %v1815 = vmax.f32 %v1806, 0.0
      %v1816 = vmax.f32 %v1807, 0.0
      %v1817 = vmax.f32 %v1808, 0.0
      %v1818 = vmax.f32 %v1809, 0.0
      %v1819 = vmax.f32 %v1810, 0.0
      %v1820 = vmax.f32 %v1811, 0.0
      %1821 = vst [vmem:[%s258] sm:$0xff] %v1812
      %1822 = vst [vmem:[%s258 + $0x8] sm:$0xff] %v1813
      %s1823 = scalar_lea.vmem %s258, 16
      %1824 = vst [vmem:[%s1823 - $0x2] sm:$0xfc] %v1814
      %1825 = vst [vmem:[%s1823 + $0x6] sm:$0xff] %v1815
      %1826 = vst [vmem:[%s1823 + $0xe] sm:$0x3] %v1816
      %s1827 = scalar_lea.vmem %s258, 32
      %1828 = vst [vmem:[%s1827 - $0x4] sm:$0xf0] %v1816
      %1829 = vst [vmem:[%s1827 + $0x4] sm:$0xff] %v1817
      %1830 = vst [vmem:[%s1827 + $0xc] sm:$0xf] %v1818
      %s1831 = scalar_lea.vmem %s258, 48
      %1832 = vst [vmem:[%s1831 - $0x6] sm:$0xc0] %v1818
      %1833 = vst [vmem:[%s1831 + $0x2] sm:$0xff] %v1819
      %1834 = vst [vmem:[%s1831 + $0xa] sm:$0x3f] %v1820
      %s1835 = smul.u32 4, %s17
      %p1836 = scmp.lt.s32.totalorder %s1835, 7
      %s1837 = scalar_select %p1836, %s1835, 7
      %s1838 = smul.addr %s1837, 2
      %s1839 = smul.addr %s1838, 8
      %s1840 = scalar_lea.vmem %s6, %s1839
      // Predicated region
      $region45: #{fcconv3_forward.1} parent=43 // pred_check
        %p1841 = pneg %p166
      $region46: #{fcconv3_forward.1} parent=43 // pred_check_branch
        %1843 = sbr.rel (%p1841) target = $region48
      $region47: #{fcconv3_forward.1} parent=43 // pred_region
        %s1844 = smul.u32 4, %s17
      $region48: #{fcconv3_forward.1} parent=43 // pred_fallthru
        _
    $region44: #{fcconv3_forward.1} parent=5 // pred_fallthru
      _
    %p1845 = scmp.le.s32.totalorder 2, %s12
    // Predicated region
    $region49: #{fcconv3_forward.1} parent=5 // pred_check
      %p1846 = pneg %p1845
    $region50: #{fcconv3_forward.1} parent=5 // pred_check_branch
      %1848 = sbr.rel (%p1846) target = $region52
    $region51: #{fcconv3_forward.1} parent=5 // pred_region
      %s1849 = ssub.s32 %s12, 2
      // Predicated region
      $region53: #{fcconv3_forward.1} parent=51 // pred_check
        %p1850 = pneg %p172
      $region54: #{fcconv3_forward.1} parent=51 // pred_check_branch
        %1852 = sbr.rel (%p1850) target = $region56
      $region55: #{fcconv3_forward.1} parent=51 // pred_region
        %s1853 = smul.u32 4, %s18
        %p1854 = scmp.lt.s32.totalorder %s1853, 7
        %s1855 = scalar_select %p1854, %s1853, 7
        %s1856 = smul.addr %s1855, 2
        %s1857 = smul.addr %s1856, 8
        %s1858 = scalar_lea.vmem %s6, %s1857
      $region56: #{fcconv3_forward.1} parent=51 // pred_fallthru
        _
    $region52: #{fcconv3_forward.1} parent=5 // pred_fallthru
      _
  $region6: #{fcconv3_forward.1} parent=0 // loop_footer
    %s16 = sadd.s32 1, %s12
  $region7: #{fcconv3_forward.1} parent=0 // loop_footer_branch
    %11 = sbr.rel target = $region3
  $region8: #{fcconv3_forward.1} parent=0 // loop_exit
    _

</llo_original>
